<compile_context>
chip_gen: v6e
topology: v6e:2x2x1
jax: 0.10.0
libtpu: 0.0.40
codegen_flags: <defaults>
</compile_context>

<pallas_src>
import jax
import jax.numpy as jnp
from jax.experimental import pallas as pl
from jax.experimental.pallas import tpu as pltpu

H_IN = W_IN = 41
C_IN = 2
C_MID = 8
C_OUT = 2
K1 = 5                       # conv1 kernel (stride=2, padding=2, dilation=2)
K3 = 3                       # conv3 kernel (stride=1, padding=1)
H_OUT = W_OUT = 19           # spatial size after conv1 == after conv3
V2_COLS = C_MID * W_OUT      # 152 (channel-major columns of the v2 slab)
TAP_STRIDE = 256             # lane stride per conv1 kh-tap block in G (128-aligned)
OUT_STRIDE = 128             # lane stride per conv3 output channel (128-aligned)
V2_ROWS = H_OUT + 2          # 21: conv3's vertical zero padding pre-baked (rows 0 & 20)


# ----------------------------------------------------------------------------
# One-time parameter transform (outside the jitted hot path)
# ----------------------------------------------------------------------------
def prepare_params(w1, b1, w3, b3):
    """w1: (5,5,2,8) HWIO, b1: (8,), w3: (3,3,8,2) HWIO, b3: (2,)."""
    f32 = jnp.float32
    w1 = w1.astype(f32)
    w3 = w3.astype(f32)

    # ---- conv1 stage-1 weights: fold even-column selection + kw-sum + horizontal
    # zero padding into a per-channel right-multiply of the raw (41,41) image.
    # Column layout of the result G: tap kh occupies lanes [kh*256, kh*256+152),
    # inner column index = co*19 + j (channel-major).
    w_idx = jnp.arange(W_IN)                              # 41
    j_idx = jnp.arange(W_OUT)                             # 19
    kw = w_idx[:, None] // 2 + 1 - j_idx[None, :]         # (41, 19)
    valid = (w_idx[:, None] % 2 == 0) & (kw >= 0) & (kw < K1)
    kw_c = jnp.clip(kw, 0, K1 - 1)
    w1t = jnp.transpose(w1, (0, 2, 3, 1))                 # (kh, ci, co, kw)
    wcol = w1t[:, :, :, kw_c] * valid[None, None, None].astype(f32)   # (5,2,8,41,19)
    wcol = jnp.transpose(wcol, (0, 1, 3, 2, 4)).reshape(K1, C_IN, W_IN, V2_COLS)
    wcol = jnp.pad(wcol, ((0, 0), (0, 0), (0, 0), (0, TAP_STRIDE - V2_COLS)))
    w1wide = jnp.transpose(wcol, (1, 2, 0, 3)).reshape(C_IN, W_IN, K1 * TAP_STRIDE)

    # ---- conv1 stage-2 row-phase selectors (left matmul weights).
    # rk[kh][r, h] = 1 iff h == 2*(r-1+kh) - 2 for interior rows r=1..19; rows 0
    # and 20 stay zero (they are conv3's vertical zero padding, pre-baked).
    r_idx = jnp.arange(V2_ROWS)                           # 21
    h_idx = jnp.arange(H_IN)                              # 41
    kh_idx = jnp.arange(K1)                               # 5
    rk = (h_idx[None, None, :] ==
          2 * (r_idx[None, :, None] - 1 + kh_idx[:, None, None]) - 2)
    interior = (r_idx >= 1) & (r_idx <= H_OUT)
    rk = (rk & interior[None, :, None]).astype(f32)       # (5, 21, 41)

    # ---- conv1 bias slab, +0.5 from the model folded, zero on the padding rows.
    b1row = jnp.repeat(b1.astype(f32) + 0.5, W_OUT)       # (152,), channel-major
    b1pad = jnp.zeros((V2_ROWS, V2_COLS), f32)
    b1pad = b1pad.at[1:1 + H_OUT, :].set(jnp.broadcast_to(b1row, (H_OUT, V2_COLS)))

    # ---- conv3 block-banded right-multiply weights: (3, 152, 256).
    # Input channel c on rows c*19:(c+1)*19; output channel co on lanes
    # co*128:co*128+19; horizontal kw-sum + padding folded into the band.
    q_idx = jnp.arange(W_OUT)
    kw3 = q_idx[:, None] - j_idx[None, :] + 1             # (19, 19)
    valid3 = (kw3 >= 0) & (kw3 < K3)
    kw3_c = jnp.clip(kw3, 0, K3 - 1)
    w3t = jnp.transpose(w3, (0, 2, 3, 1))                 # (kh, c, co, kw)
    band3 = w3t[:, :, :, kw3_c] * valid3[None, None, None].astype(f32)  # (3,8,2,19,19)
    band3 = jnp.transpose(band3, (0, 2, 1, 3, 4)).reshape(K3, C_OUT, V2_COLS, W_OUT)
    band3 = jnp.pad(band3, ((0, 0), (0, 0), (0, 0), (0, OUT_STRIDE - W_OUT)))
    w3big = jnp.transpose(band3, (0, 2, 1, 3)).reshape(K3, V2_COLS, C_OUT * OUT_STRIDE)

    # ---- conv3 bias row, laid out to match the 128-strided output lanes.
    b3row = jnp.pad(jnp.repeat(b3.astype(f32)[:, None], W_OUT, axis=1),
                    ((0, 0), (0, OUT_STRIDE - W_OUT))).reshape(1, C_OUT * OUT_STRIDE)

    return w1wide, rk, b1pad, w3big, b3row


# ----------------------------------------------------------------------------
# Kernel: 10 matmuls total (conv1: 2 wide + 5 row-reduce, conv3: 3), all
# dot-accumulate chains; the only remaining shifted slices are two sublane
# shifts of the (21,152) v2 slab in conv3.
# ----------------------------------------------------------------------------
def _fused_conv_kernel(x_ref, w1w_ref, rk_ref, b1p_ref, w3_ref, b3_ref, o_ref):
    f32 = jnp.float32

    # ---- conv1 stage 1: column conv + channel reduce, all kh taps in lanes.
    g = jnp.dot(x_ref[0, 0], w1w_ref[0], preferred_element_type=f32)
    g = g + jnp.dot(x_ref[0, 1], w1w_ref[1], preferred_element_type=f32)   # (41, 1280)

    # ---- conv1 stage 2: row phase-select + kh reduce (bias/+0.5 pre-folded).
    # v2p rows 0 and 20 stay zero = conv3's vertical zero padding.
    v2p = b1p_ref[...]                                                     # (21, 152)
    for kh in range(K1):
        blk = g[:, kh * TAP_STRIDE: kh * TAP_STRIDE + V2_COLS]             # aligned start
        v2p = v2p + jnp.dot(rk_ref[kh], blk, preferred_element_type=f32)   # (21, 152)

    # ---- conv3: 3 block-banded matmuls (K=152, N=256).
    out = b3_ref[...] + jnp.dot(v2p[0:H_OUT, :], w3_ref[0], preferred_element_type=f32)
    out = out + jnp.dot(v2p[1:1 + H_OUT, :], w3_ref[1], preferred_element_type=f32)
    out = out + jnp.dot(v2p[2:2 + H_OUT, :], w3_ref[2], preferred_element_type=f32)

    # Output channels live at 128-aligned lane offsets -> aligned epilogue slices.
    o_ref[0, 0] = out[:, 0:W_OUT]
    o_ref[0, 1] = out[:, OUT_STRIDE:OUT_STRIDE + W_OUT]


# ----------------------------------------------------------------------------
# Hot-path wrapper: a single pallas_call, nothing else.
# ----------------------------------------------------------------------------
def model_forward(x_nchw, w1wide, rk, b1pad, w3big, b3row):
    """x_nchw: (1, 2, 41, 41) f32 -> (1, 2, 19, 19) f32."""
    # TODO(synk): if batch > 1 is ever needed, add a leading "parallel" grid axis
    # over batch so both v7x TensorCores get work; at batch=1 no grid is needed.
    return pl.pallas_call(
        _fused_conv_kernel,
        out_shape=jax.ShapeDtypeStruct((1, C_OUT, H_OUT, W_OUT), jnp.float32),
        in_specs=[pl.BlockSpec(memory_space=pltpu.MemorySpace.VMEM)] * 6,
        out_specs=pl.BlockSpec(memory_space=pltpu.MemorySpace.VMEM),
    )(x_nchw, w1wide, rk, b1pad, w3big, b3row)


# ----------------------------------------------------------------------------
# Pure-JAX reference (NHWC / HWIO) for validation
# ----------------------------------------------------------------------------
def _reference_forward(x_nchw, w1, b1, w3, b3):
    x = jnp.transpose(x_nchw, (0, 2, 3, 1))
    v1 = jax.lax.conv_general_dilated(
        x, w1, window_strides=(2, 2), padding=((2, 2), (2, 2)),
        rhs_dilation=(2, 2), dimension_numbers=("NHWC", "HWIO", "NHWC"),
        precision=jax.lax.Precision.HIGHEST) + b1
    v2 = v1 + 0.5
    v3 = jax.lax.conv_general_dilated(
        v2, w3, window_strides=(1, 1), padding=((1, 1), (1, 1)),
        dimension_numbers=("NHWC", "HWIO", "NHWC"),
        precision=jax.lax.Precision.HIGHEST) + b3
    return jnp.transpose(v3, (0, 3, 1, 2))


if __name__ == "__main__":
    key = jax.random.PRNGKey(0)
    k_x, k_w1, k_b1, k_w3, k_b3 = jax.random.split(key, 5)

    # Deterministic parameter init (uniform, roughly PyTorch-style fan-in bound)
    bound1 = 1.0 / (C_IN * K1 * K1) ** 0.5
    bound3 = 1.0 / (C_MID * K3 * K3) ** 0.5
    w1 = jax.random.uniform(k_w1, (K1, K1, C_IN, C_MID), jnp.float32, -bound1, bound1)
    b1 = jax.random.uniform(k_b1, (C_MID,), jnp.float32, -bound1, bound1)
    w3 = jax.random.uniform(k_w3, (K3, K3, C_MID, C_OUT), jnp.float32, -bound3, bound3)
    b3 = jax.random.uniform(k_b3, (C_OUT,), jnp.float32, -bound3, bound3)

    x1 = jax.random.normal(k_x, (1, C_IN, H_IN, W_IN), jnp.float32)

    # One-time weight transform (outside the hot path).
    w1wide, rk, b1pad, w3big, b3row = prepare_params(w1, b1, w3, b3)

    fwd = jax.jit(model_forward)
    out = fwd(x1, w1wide, rk, b1pad, w3big, b3row)
    jax.block_until_ready(out)

    ref = _reference_forward(x1, w1, b1, w3, b3)
    assert out.shape == (1, C_OUT, H_OUT, W_OUT), out.shape
    assert jnp.allclose(out, ref, atol=1e-4, rtol=1e-4), \
        float(jnp.max(jnp.abs(out - ref)))

    print("KERNEL_OK")
</pallas_src>

<mosaic_0001>
module attributes {stable_mosaic.version = 11 : i64} {
  func.func @_fused_conv_kernel(%arg0: memref<1x2x41x41xf32, #tpu.memory_space<vmem>>, %arg1: memref<2x41x1280xf32, #tpu.memory_space<vmem>>, %arg2: memref<5x21x41xf32, #tpu.memory_space<vmem>>, %arg3: memref<21x152xf32, #tpu.memory_space<vmem>>, %arg4: memref<3x152x256xf32, #tpu.memory_space<vmem>>, %arg5: memref<1x256xf32, #tpu.memory_space<vmem>>, %arg6: memref<1x2x19x19xf32, #tpu.memory_space<vmem>>) attributes {dimension_semantics = [], scalar_prefetch = 0 : i64, scratch_operands = 0 : i64, tpu.core_type = #tpu.core_type<tc>} {
    %c0 = arith.constant 0 : index
    %c0_0 = arith.constant 0 : index
    %c0_1 = arith.constant 0 : index
    %c0_2 = arith.constant 0 : index
    %0 = vector.load %arg0[%c0, %c0_0, %c0_1, %c0_2] : memref<1x2x41x41xf32, #tpu.memory_space<vmem>>, vector<1x1x41x41xf32>
    %1 = vector.shape_cast %0 : vector<1x1x41x41xf32> to vector<41x41xf32>
    %c0_3 = arith.constant 0 : index
    %c0_4 = arith.constant 0 : index
    %c0_5 = arith.constant 0 : index
    %2 = vector.load %arg1[%c0_3, %c0_4, %c0_5] : memref<2x41x1280xf32, #tpu.memory_space<vmem>>, vector<1x41x1280xf32>
    %3 = vector.shape_cast %2 : vector<1x41x1280xf32> to vector<41x1280xf32>
    %cst = arith.constant dense<0.000000e+00> : vector<41x1280xf32>
    %4 = tpu.matmul %1, %3, %cst {dimension_numbers = #tpu.dot_dimension_numbers<[1], [0], [0], [1], [0, 0, 1, 1], [], []>} : vector<41x41xf32>, vector<41x1280xf32>, vector<41x1280xf32> -> vector<41x1280xf32>
    %c0_6 = arith.constant 0 : index
    %c1 = arith.constant 1 : index
    %c0_7 = arith.constant 0 : index
    %c0_8 = arith.constant 0 : index
    %5 = vector.load %arg0[%c0_6, %c1, %c0_7, %c0_8] : memref<1x2x41x41xf32, #tpu.memory_space<vmem>>, vector<1x1x41x41xf32>
    %6 = vector.shape_cast %5 : vector<1x1x41x41xf32> to vector<41x41xf32>
    %c1_9 = arith.constant 1 : index
    %c0_10 = arith.constant 0 : index
    %c0_11 = arith.constant 0 : index
    %7 = vector.load %arg1[%c1_9, %c0_10, %c0_11] : memref<2x41x1280xf32, #tpu.memory_space<vmem>>, vector<1x41x1280xf32>
    %8 = vector.shape_cast %7 : vector<1x41x1280xf32> to vector<41x1280xf32>
    %cst_12 = arith.constant dense<0.000000e+00> : vector<41x1280xf32>
    %9 = tpu.matmul %6, %8, %cst_12 {dimension_numbers = #tpu.dot_dimension_numbers<[1], [0], [0], [1], [0, 0, 1, 1], [], []>} : vector<41x41xf32>, vector<41x1280xf32>, vector<41x1280xf32> -> vector<41x1280xf32>
    %10 = arith.addf %4, %9 : vector<41x1280xf32>
    %c0_13 = arith.constant 0 : index
    %c0_14 = arith.constant 0 : index
    %11 = vector.load %arg3[%c0_13, %c0_14] : memref<21x152xf32, #tpu.memory_space<vmem>>, vector<21x152xf32>
    %12 = vector.extract_strided_slice %10 {offsets = [0, 0], sizes = [41, 152], strides = [1, 1]} : vector<41x1280xf32> to vector<41x152xf32>
    %c0_15 = arith.constant 0 : index
    %c0_16 = arith.constant 0 : index
    %c0_17 = arith.constant 0 : index
    %13 = vector.load %arg2[%c0_15, %c0_16, %c0_17] : memref<5x21x41xf32, #tpu.memory_space<vmem>>, vector<1x21x41xf32>
    %14 = vector.shape_cast %13 : vector<1x21x41xf32> to vector<21x41xf32>
    %cst_18 = arith.constant dense<0.000000e+00> : vector<21x152xf32>
    %15 = tpu.matmul %14, %12, %cst_18 {dimension_numbers = #tpu.dot_dimension_numbers<[1], [0], [0], [1], [0, 0, 1, 1], [], []>} : vector<21x41xf32>, vector<41x152xf32>, vector<21x152xf32> -> vector<21x152xf32>
    %16 = arith.addf %11, %15 : vector<21x152xf32>
    %17 = vector.extract_strided_slice %10 {offsets = [0, 256], sizes = [41, 152], strides = [1, 1]} : vector<41x1280xf32> to vector<41x152xf32>
    %c1_19 = arith.constant 1 : index
    %c0_20 = arith.constant 0 : index
    %c0_21 = arith.constant 0 : index
    %18 = vector.load %arg2[%c1_19, %c0_20, %c0_21] : memref<5x21x41xf32, #tpu.memory_space<vmem>>, vector<1x21x41xf32>
    %19 = vector.shape_cast %18 : vector<1x21x41xf32> to vector<21x41xf32>
    %cst_22 = arith.constant dense<0.000000e+00> : vector<21x152xf32>
    %20 = tpu.matmul %19, %17, %cst_22 {dimension_numbers = #tpu.dot_dimension_numbers<[1], [0], [0], [1], [0, 0, 1, 1], [], []>} : vector<21x41xf32>, vector<41x152xf32>, vector<21x152xf32> -> vector<21x152xf32>
    %21 = arith.addf %16, %20 : vector<21x152xf32>
    %22 = vector.extract_strided_slice %10 {offsets = [0, 512], sizes = [41, 152], strides = [1, 1]} : vector<41x1280xf32> to vector<41x152xf32>
    %c2 = arith.constant 2 : index
    %c0_23 = arith.constant 0 : index
    %c0_24 = arith.constant 0 : index
    %23 = vector.load %arg2[%c2, %c0_23, %c0_24] : memref<5x21x41xf32, #tpu.memory_space<vmem>>, vector<1x21x41xf32>
    %24 = vector.shape_cast %23 : vector<1x21x41xf32> to vector<21x41xf32>
    %cst_25 = arith.constant dense<0.000000e+00> : vector<21x152xf32>
    %25 = tpu.matmul %24, %22, %cst_25 {dimension_numbers = #tpu.dot_dimension_numbers<[1], [0], [0], [1], [0, 0, 1, 1], [], []>} : vector<21x41xf32>, vector<41x152xf32>, vector<21x152xf32> -> vector<21x152xf32>
    %26 = arith.addf %21, %25 : vector<21x152xf32>
    %27 = vector.extract_strided_slice %10 {offsets = [0, 768], sizes = [41, 152], strides = [1, 1]} : vector<41x1280xf32> to vector<41x152xf32>
    %c3 = arith.constant 3 : index
    %c0_26 = arith.constant 0 : index
    %c0_27 = arith.constant 0 : index
    %28 = vector.load %arg2[%c3, %c0_26, %c0_27] : memref<5x21x41xf32, #tpu.memory_space<vmem>>, vector<1x21x41xf32>
    %29 = vector.shape_cast %28 : vector<1x21x41xf32> to vector<21x41xf32>
    %cst_28 = arith.constant dense<0.000000e+00> : vector<21x152xf32>
    %30 = tpu.matmul %29, %27, %cst_28 {dimension_numbers = #tpu.dot_dimension_numbers<[1], [0], [0], [1], [0, 0, 1, 1], [], []>} : vector<21x41xf32>, vector<41x152xf32>, vector<21x152xf32> -> vector<21x152xf32>
    %31 = arith.addf %26, %30 : vector<21x152xf32>
    %32 = vector.extract_strided_slice %10 {offsets = [0, 1024], sizes = [41, 152], strides = [1, 1]} : vector<41x1280xf32> to vector<41x152xf32>
    %c4 = arith.constant 4 : index
    %c0_29 = arith.constant 0 : index
    %c0_30 = arith.constant 0 : index
    %33 = vector.load %arg2[%c4, %c0_29, %c0_30] : memref<5x21x41xf32, #tpu.memory_space<vmem>>, vector<1x21x41xf32>
    %34 = vector.shape_cast %33 : vector<1x21x41xf32> to vector<21x41xf32>
    %cst_31 = arith.constant dense<0.000000e+00> : vector<21x152xf32>
    %35 = tpu.matmul %34, %32, %cst_31 {dimension_numbers = #tpu.dot_dimension_numbers<[1], [0], [0], [1], [0, 0, 1, 1], [], []>} : vector<21x41xf32>, vector<41x152xf32>, vector<21x152xf32> -> vector<21x152xf32>
    %36 = arith.addf %31, %35 : vector<21x152xf32>
    %c0_32 = arith.constant 0 : index
    %c0_33 = arith.constant 0 : index
    %37 = vector.load %arg5[%c0_32, %c0_33] : memref<1x256xf32, #tpu.memory_space<vmem>>, vector<1x256xf32>
    %38 = vector.extract_strided_slice %36 {offsets = [0, 0], sizes = [19, 152], strides = [1, 1]} : vector<21x152xf32> to vector<19x152xf32>
    %c0_34 = arith.constant 0 : index
    %c0_35 = arith.constant 0 : index
    %c0_36 = arith.constant 0 : index
    %39 = vector.load %arg4[%c0_34, %c0_35, %c0_36] : memref<3x152x256xf32, #tpu.memory_space<vmem>>, vector<1x152x256xf32>
    %40 = vector.shape_cast %39 : vector<1x152x256xf32> to vector<152x256xf32>
    %cst_37 = arith.constant dense<0.000000e+00> : vector<19x256xf32>
    %41 = tpu.matmul %38, %40, %cst_37 {dimension_numbers = #tpu.dot_dimension_numbers<[1], [0], [0], [1], [0, 0, 1, 1], [], []>} : vector<19x152xf32>, vector<152x256xf32>, vector<19x256xf32> -> vector<19x256xf32>
    %42 = vector.broadcast %37 : vector<1x256xf32> to vector<19x256xf32>
    %43 = arith.addf %42, %41 : vector<19x256xf32>
    %44 = vector.extract_strided_slice %36 {offsets = [1, 0], sizes = [19, 152], strides = [1, 1]} : vector<21x152xf32> to vector<19x152xf32>
    %c1_38 = arith.constant 1 : index
    %c0_39 = arith.constant 0 : index
    %c0_40 = arith.constant 0 : index
    %45 = vector.load %arg4[%c1_38, %c0_39, %c0_40] : memref<3x152x256xf32, #tpu.memory_space<vmem>>, vector<1x152x256xf32>
    %46 = vector.shape_cast %45 : vector<1x152x256xf32> to vector<152x256xf32>
    %cst_41 = arith.constant dense<0.000000e+00> : vector<19x256xf32>
    %47 = tpu.matmul %44, %46, %cst_41 {dimension_numbers = #tpu.dot_dimension_numbers<[1], [0], [0], [1], [0, 0, 1, 1], [], []>} : vector<19x152xf32>, vector<152x256xf32>, vector<19x256xf32> -> vector<19x256xf32>
    %48 = arith.addf %43, %47 : vector<19x256xf32>
    %49 = vector.extract_strided_slice %36 {offsets = [2, 0], sizes = [19, 152], strides = [1, 1]} : vector<21x152xf32> to vector<19x152xf32>
    %c2_42 = arith.constant 2 : index
    %c0_43 = arith.constant 0 : index
    %c0_44 = arith.constant 0 : index
    %50 = vector.load %arg4[%c2_42, %c0_43, %c0_44] : memref<3x152x256xf32, #tpu.memory_space<vmem>>, vector<1x152x256xf32>
    %51 = vector.shape_cast %50 : vector<1x152x256xf32> to vector<152x256xf32>
    %cst_45 = arith.constant dense<0.000000e+00> : vector<19x256xf32>
    %52 = tpu.matmul %49, %51, %cst_45 {dimension_numbers = #tpu.dot_dimension_numbers<[1], [0], [0], [1], [0, 0, 1, 1], [], []>} : vector<19x152xf32>, vector<152x256xf32>, vector<19x256xf32> -> vector<19x256xf32>
    %53 = arith.addf %48, %52 : vector<19x256xf32>
    %54 = vector.extract_strided_slice %53 {offsets = [0, 0], sizes = [19, 19], strides = [1, 1]} : vector<19x256xf32> to vector<19x19xf32>
    %c0_46 = arith.constant 0 : index
    %c0_47 = arith.constant 0 : index
    %c0_48 = arith.constant 0 : index
    %c0_49 = arith.constant 0 : index
    %55 = vector.load %arg6[%c0_46, %c0_47, %c0_48, %c0_49] : memref<1x2x19x19xf32, #tpu.memory_space<vmem>>, vector<1x1x19x19xf32>
    %56 = vector.shape_cast %55 : vector<1x1x19x19xf32> to vector<19x19xf32>
    %57 = vector.shape_cast %54 : vector<19x19xf32> to vector<1x1x19x19xf32>
    tpu.vector_store %arg6[%c0_46, %c0_47, %c0_48, %c0_49], %57 {strides = array<i32>} : memref<1x2x19x19xf32, #tpu.memory_space<vmem>>, vector<1x1x19x19xf32>,
    %58 = vector.extract_strided_slice %53 {offsets = [0, 128], sizes = [19, 19], strides = [1, 1]} : vector<19x256xf32> to vector<19x19xf32>
    %c0_50 = arith.constant 0 : index
    %c1_51 = arith.constant 1 : index
    %c0_52 = arith.constant 0 : index
    %c0_53 = arith.constant 0 : index
    %59 = vector.load %arg6[%c0_50, %c1_51, %c0_52, %c0_53] : memref<1x2x19x19xf32, #tpu.memory_space<vmem>>, vector<1x1x19x19xf32>
    %60 = vector.shape_cast %59 : vector<1x1x19x19xf32> to vector<19x19xf32>
    %61 = vector.shape_cast %58 : vector<19x19xf32> to vector<1x1x19x19xf32>
    tpu.vector_store %arg6[%c0_50, %c1_51, %c0_52, %c0_53], %61 {strides = array<i32>} : memref<1x2x19x19xf32, #tpu.memory_space<vmem>>, vector<1x1x19x19xf32>,
    return
  }
}

</mosaic_0001>

<llo_original>
// kernel: model_forward.1
$region0: #{model_forward.1}
  #allocation0 [shape = 'u32[]', space=smem, size = 0x4, offset = 0x4, fixed_abs, tag = 'smem constant byte address 0x4 - core index']
  #allocation1 [shape = 'u32[144,128]{1,0:T(1,128)}', space=vmem, size = 0x12000, scoped, tag = 'internal scratch']
  %s0 = inlined_call_operand.vmem [shape: f32[1,2,41,41], index: 0, kind: input, shape index: {}]
  %s1 = inlined_call_operand.vmem [shape: f32[2,41,1280], index: 1, kind: input, shape index: {}]
  %s2 = inlined_call_operand.vmem [shape: f32[5,21,41], index: 2, kind: input, shape index: {}]
  %s3 = inlined_call_operand.vmem [shape: f32[21,152], index: 3, kind: input, shape index: {}]
  %s4 = inlined_call_operand.vmem [shape: f32[3,152,256], index: 4, kind: input, shape index: {}]
  %s5 = inlined_call_operand.vmem [shape: f32[1,256], index: 5, kind: input, shape index: {}]
  %s6 = inlined_call_operand.vmem [shape: f32[1,2,19,19], index: 6, kind: output, shape index: {}]
  %s7 = sld [smem:[#allocation0]]
  $region34: #{model_forward.1} parent=0
    _
  %s9 = ssub.s32 1, %s7
  %s10 = scalar_select 0, %s9, %s7
  // Predicated region
  $region2: #{model_forward.1} parent=0 // pred_check
    _
  $region3: #{model_forward.1} parent=0 // pred_check_branch
    %12 = sbr.rel (0) target = $region5
  $region4: #{model_forward.1} parent=0 // pred_region
    _
  $region5: #{model_forward.1} parent=0 // pred_fallthru
    _
  // Predicated region
  $region6: #{model_forward.1} parent=0 // pred_check
    _
  $region7: #{model_forward.1} parent=0 // pred_check_branch
    %14 = sbr.rel (0) target = $region9
  $region8: #{model_forward.1} parent=0 // pred_region
    _
  $region9: #{model_forward.1} parent=0 // pred_fallthru
    _
  // Predicated region
  $region10: #{model_forward.1} parent=0 // pred_check
    _
  $region11: #{model_forward.1} parent=0 // pred_check_branch
    %16 = sbr.rel (0) target = $region13
  $region12: #{model_forward.1} parent=0 // pred_region
    _
  $region13: #{model_forward.1} parent=0 // pred_fallthru
    _
  // Predicated region
  $region14: #{model_forward.1} parent=0 // pred_check
    _
  $region15: #{model_forward.1} parent=0 // pred_check_branch
    %18 = sbr.rel (0) target = $region17
  $region16: #{model_forward.1} parent=0 // pred_region
    _
  $region17: #{model_forward.1} parent=0 // pred_fallthru
    _
  // Predicated region
  $region18: #{model_forward.1} parent=0 // pred_check
    _
  $region19: #{model_forward.1} parent=0 // pred_check_branch
    %20 = sbr.rel (0) target = $region21
  $region20: #{model_forward.1} parent=0 // pred_region
    _
  $region21: #{model_forward.1} parent=0 // pred_fallthru
    _
  // Predicated region
  $region22: #{model_forward.1} parent=0 // pred_check
    _
  $region23: #{model_forward.1} parent=0 // pred_check_branch
    %22 = sbr.rel (0) target = $region25
  $region24: #{model_forward.1} parent=0 // pred_region
    _
  $region25: #{model_forward.1} parent=0 // pred_fallthru
    _
  %v23 = vld [vmem:[%s0] sm:$0xff]
  %v24 = vld [vmem:[%s0 + $0x8] sm:$0xff]
  %v25 = vld [vmem:[%s0 + $0x10] sm:$0xff]
  %v26 = vld [vmem:[%s0 + $0x18] sm:$0xff]
  %v27 = vld [vmem:[%s0 + $0x20] sm:$0xff]
  %v28 = vld [vmem:[%s0 + $0x28] sm:$0x1]
  %v29 = vld [vmem:[%s1] sm:$0xff]
  %v30 = vld [vmem:[%s1 + $0x8] sm:$0xff]
  %v31 = vld [vmem:[%s1 + $0x10] sm:$0xff]
  %v32 = vld [vmem:[%s1 + $0x18] sm:$0xff]
  %v33 = vld [vmem:[%s1 + $0x20] sm:$0xff]
  %v34 = vld [vmem:[%s1 + $0x28] sm:$0xff]
  %v35 = vld [vmem:[%s1 + $0x30] sm:$0xff]
  %v36 = vld [vmem:[%s1 + $0x38] sm:$0xff]
  %v37 = vld [vmem:[%s1 + $0x40] sm:$0xff]
  %v38 = vld [vmem:[%s1 + $0x48] sm:$0xff]
  %v39 = vld [vmem:[%s1 + $0x50] sm:$0xff]
  %v40 = vld [vmem:[%s1 + $0x58] sm:$0xff]
  %v41 = vld [vmem:[%s1 + $0x60] sm:$0xff]
  %v42 = vld [vmem:[%s1 + $0x68] sm:$0xff]
  %v43 = vld [vmem:[%s1 + $0x70] sm:$0xff]
  %v44 = vld [vmem:[%s1 + $0x78] sm:$0xff]
  %v45 = vld [vmem:[%s1 + $0x80] sm:$0xff]
  %v46 = vld [vmem:[%s1 + $0x88] sm:$0xff]
  %v47 = vld [vmem:[%s1 + $0x90] sm:$0xff]
  %v48 = vld [vmem:[%s1 + $0x98] sm:$0xff]
  %v49 = vld [vmem:[%s1 + $0xa0] sm:$0xff]
  %v50 = vld [vmem:[%s1 + $0xa8] sm:$0xff]
  %v51 = vld [vmem:[%s1 + $0xb0] sm:$0xff]
  %v52 = vld [vmem:[%s1 + $0xb8] sm:$0xff]
  %v53 = vld [vmem:[%s1 + $0xc0] sm:$0xff]
  %v54 = vld [vmem:[%s1 + $0xc8] sm:$0xff]
  %v55 = vld [vmem:[%s1 + $0xd0] sm:$0xff]
  %v56 = vld [vmem:[%s1 + $0xd8] sm:$0xff]
  %v57 = vld [vmem:[%s1 + $0xe0] sm:$0xff]
  %v58 = vld [vmem:[%s1 + $0xe8] sm:$0xff]
  %v59 = vld [vmem:[%s1 + $0xf0] sm:$0xff]
  %v60 = vld [vmem:[%s1 + $0xf8] sm:$0xff]
  %v61 = vld [vmem:[%s1 + $0x100] sm:$0xff]
  %v62 = vld [vmem:[%s1 + $0x108] sm:$0xff]
  %v63 = vld [vmem:[%s1 + $0x110] sm:$0xff]
  %v64 = vld [vmem:[%s1 + $0x118] sm:$0xff]
  %v65 = vld [vmem:[%s1 + $0x120] sm:$0xff]
  %v66 = vld [vmem:[%s1 + $0x128] sm:$0xff]
  %v67 = vld [vmem:[%s1 + $0x130] sm:$0xff]
  %v68 = vld [vmem:[%s1 + $0x138] sm:$0xff]
  %v69 = vld [vmem:[%s1 + $0x140] sm:$0xff]
  %v70 = vld [vmem:[%s1 + $0x148] sm:$0xff]
  %v71 = vld [vmem:[%s1 + $0x150] sm:$0xff]
  %v72 = vld [vmem:[%s1 + $0x158] sm:$0xff]
  %v73 = vld [vmem:[%s1 + $0x160] sm:$0xff]
  %v74 = vld [vmem:[%s1 + $0x168] sm:$0xff]
  %v75 = vld [vmem:[%s1 + $0x170] sm:$0xff]
  %v76 = vld [vmem:[%s1 + $0x178] sm:$0xff]
  %v77 = vld [vmem:[%s1 + $0x180] sm:$0xff]
  %v78 = vld [vmem:[%s1 + $0x188] sm:$0xff]
  %v79 = vld [vmem:[%s1 + $0x190] sm:$0x1]
  %v80 = vld [vmem:[%s1 + $0x198] sm:$0x1]
  %v81 = vld [vmem:[%s1 + $0x1a0] sm:$0x1]
  %v82 = vld [vmem:[%s1 + $0x1a8] sm:$0x1]
  %v83 = vld [vmem:[%s1 + $0x1b0] sm:$0x1]
  %v84 = vld [vmem:[%s1 + $0x1b8] sm:$0x1]
  %v85 = vld [vmem:[%s1 + $0x1c0] sm:$0x1]
  %v86 = vld [vmem:[%s1 + $0x1c8] sm:$0x1]
  %v87 = vld [vmem:[%s1 + $0x1d0] sm:$0x1]
  %v88 = vld [vmem:[%s1 + $0x1d8] sm:$0x1]
  %s89 = scalar_lea.vmem %s0, 48
  %v90 = vld [vmem:[%s89] sm:$0xff]
  %v91 = vld [vmem:[%s89 + $0x8] sm:$0xff]
  %v92 = vld [vmem:[%s89 + $0x10] sm:$0xff]
  %v93 = vld [vmem:[%s89 + $0x18] sm:$0xff]
  %v94 = vld [vmem:[%s89 + $0x20] sm:$0xff]
  %v95 = vld [vmem:[%s89 + $0x28] sm:$0x1]
  %s96 = scalar_lea.vmem %s1, 480
  %v97 = vld [vmem:[%s96] sm:$0xff]
  %v98 = vld [vmem:[%s96 + $0x8] sm:$0xff]
  %v99 = vld [vmem:[%s96 + $0x10] sm:$0xff]
  %v100 = vld [vmem:[%s96 + $0x18] sm:$0xff]
  %v101 = vld [vmem:[%s96 + $0x20] sm:$0xff]
  %v102 = vld [vmem:[%s96 + $0x28] sm:$0xff]
  %v103 = vld [vmem:[%s96 + $0x30] sm:$0xff]
  %v104 = vld [vmem:[%s96 + $0x38] sm:$0xff]
  %v105 = vld [vmem:[%s96 + $0x40] sm:$0xff]
  %v106 = vld [vmem:[%s96 + $0x48] sm:$0xff]
  %v107 = vld [vmem:[%s96 + $0x50] sm:$0xff]
  %v108 = vld [vmem:[%s96 + $0x58] sm:$0xff]
  %v109 = vld [vmem:[%s96 + $0x60] sm:$0xff]
  %v110 = vld [vmem:[%s96 + $0x68] sm:$0xff]
  %v111 = vld [vmem:[%s96 + $0x70] sm:$0xff]
  %v112 = vld [vmem:[%s96 + $0x78] sm:$0xff]
  %v113 = vld [vmem:[%s96 + $0x80] sm:$0xff]
  %v114 = vld [vmem:[%s96 + $0x88] sm:$0xff]
  %v115 = vld [vmem:[%s96 + $0x90] sm:$0xff]
  %v116 = vld [vmem:[%s96 + $0x98] sm:$0xff]
  %v117 = vld [vmem:[%s96 + $0xa0] sm:$0xff]
  %v118 = vld [vmem:[%s96 + $0xa8] sm:$0xff]
  %v119 = vld [vmem:[%s96 + $0xb0] sm:$0xff]
  %v120 = vld [vmem:[%s96 + $0xb8] sm:$0xff]
  %v121 = vld [vmem:[%s96 + $0xc0] sm:$0xff]
  %v122 = vld [vmem:[%s96 + $0xc8] sm:$0xff]
  %v123 = vld [vmem:[%s96 + $0xd0] sm:$0xff]
  %v124 = vld [vmem:[%s96 + $0xd8] sm:$0xff]
  %v125 = vld [vmem:[%s96 + $0xe0] sm:$0xff]
  %v126 = vld [vmem:[%s96 + $0xe8] sm:$0xff]
  %v127 = vld [vmem:[%s96 + $0xf0] sm:$0xff]
  %v128 = vld [vmem:[%s96 + $0xf8] sm:$0xff]
  %v129 = vld [vmem:[%s96 + $0x100] sm:$0xff]
  %v130 = vld [vmem:[%s96 + $0x108] sm:$0xff]
  %v131 = vld [vmem:[%s96 + $0x110] sm:$0xff]
  %v132 = vld [vmem:[%s96 + $0x118] sm:$0xff]
  %v133 = vld [vmem:[%s96 + $0x120] sm:$0xff]
  %v134 = vld [vmem:[%s96 + $0x128] sm:$0xff]
  %v135 = vld [vmem:[%s96 + $0x130] sm:$0xff]
  %v136 = vld [vmem:[%s96 + $0x138] sm:$0xff]
  %v137 = vld [vmem:[%s96 + $0x140] sm:$0xff]
  %v138 = vld [vmem:[%s96 + $0x148] sm:$0xff]
  %v139 = vld [vmem:[%s96 + $0x150] sm:$0xff]
  %v140 = vld [vmem:[%s96 + $0x158] sm:$0xff]
  %v141 = vld [vmem:[%s96 + $0x160] sm:$0xff]
  %v142 = vld [vmem:[%s96 + $0x168] sm:$0xff]
  %v143 = vld [vmem:[%s96 + $0x170] sm:$0xff]
  %v144 = vld [vmem:[%s96 + $0x178] sm:$0xff]
  %v145 = vld [vmem:[%s96 + $0x180] sm:$0xff]
  %v146 = vld [vmem:[%s96 + $0x188] sm:$0xff]
  %v147 = vld [vmem:[%s96 + $0x190] sm:$0x1]
  %v148 = vld [vmem:[%s96 + $0x198] sm:$0x1]
  %v149 = vld [vmem:[%s96 + $0x1a0] sm:$0x1]
  %v150 = vld [vmem:[%s96 + $0x1a8] sm:$0x1]
  %v151 = vld [vmem:[%s96 + $0x1b0] sm:$0x1]
  %v152 = vld [vmem:[%s96 + $0x1b8] sm:$0x1]
  %v153 = vld [vmem:[%s96 + $0x1c0] sm:$0x1]
  %v154 = vld [vmem:[%s96 + $0x1c8] sm:$0x1]
  %v155 = vld [vmem:[%s96 + $0x1d0] sm:$0x1]
  %v156 = vld [vmem:[%s96 + $0x1d8] sm:$0x1]
  %vm157 = vcmask 334848
  %v159 = vsel %vm157, %v90, 0
  %v162 = vsel %vm157, %v91, 0
  %v165 = vsel %vm157, %v92, 0
  %v168 = vsel %vm157, %v93, 0
  %v171 = vsel %vm157, %v94, 0
  %v174 = vsel %vm157, %v95, 0
  %vm176 = vcmask 1040384
  %v178 = vsel %vm176, %v147, 0
  %v181 = vsel %vm176, %v148, 0
  %v184 = vsel %vm176, %v149, 0
  %v187 = vsel %vm176, %v150, 0
  %v190 = vsel %vm176, %v151, 0
  %v193 = vsel %vm176, %v152, 0
  %v196 = vsel %vm176, %v153, 0
  %v199 = vsel %vm176, %v154, 0
  %v202 = vsel %vm176, %v155, 0
  %v205 = vsel %vm176, %v156, 0
  %207 = vmatprep.subr.mxu0 0.0
  %208 = vmatpush1.msra.mxu0 0.0
  %209 = vmatprep.subr.mxu0 0.0
  %210 = vmatpush1.msra.mxu0 0.0
  %211 = vmatprep.subr.mxu0 0.0
  %212 = vmatpush1.msra.mxu0 0.0
  %213 = vmatprep.subr.mxu0 0.0
  %214 = vmatpush1.msra.mxu0 0.0
  %215 = vmatprep.subr.mxu0 0.0
  %216 = vmatpush1.msra.mxu0 0.0
  %217 = vmatprep.subr.mxu0 0.0
  %218 = vmatpush1.msra.mxu0 0.0
  %219 = vmatprep.subr.mxu0 0.0
  %220 = vmatpush1.msra.mxu0 0.0
  %221 = vmatprep.subr.mxu0 0.0
  %222 = vmatpush1.msra.mxu0 0.0
  %223 = vmatprep.subr.mxu0 0.0
  %224 = vmatpush1.msra.mxu0 0.0
  %225 = vmatprep.subr.mxu0 0.0
  %226 = vmatpush1.msra.mxu0 0.0
  %227 = vmatprep.subr.mxu0 %v181
  %228 = vmatpush1.msra.mxu0 %v178
  %229 = vmatprep.subr.mxu0 %v138
  %230 = vmatpush1.msra.mxu0 %v137
  %231 = vmatprep.subr.mxu0 %v128
  %232 = vmatpush1.msra.mxu0 %v127
  %233 = vmatprep.subr.mxu0 %v118
  %234 = vmatpush1.msra.mxu0 %v117
  %235 = vmatprep.subr.mxu0 %v108
  %236 = vmatpush1.msra.mxu0 %v107
  %237 = vmatprep.subr.mxu0 %v98
  %238 = vmatpush1.msra.mxu0 %v97
  %239 = vmatprep.subr.mxu0 0.0
  %240 = vmatpush2.msra.mxu0 0.0
  %241 = vmatprep.subr.mxu0 0.0
  %242 = vmatpush2.msra.mxu0 0.0
  %243 = vmatprep.subr.mxu0 0.0
  %244 = vmatpush2.msra.mxu0 0.0
  %245 = vmatprep.subr.mxu0 0.0
  %246 = vmatpush2.msra.mxu0 0.0
  %247 = vmatprep.subr.mxu0 0.0
  %248 = vmatpush2.msra.mxu0 0.0
  %249 = vmatprep.subr.mxu0 0.0
  %250 = vmatpush2.msra.mxu0 0.0
  %251 = vmatprep.subr.mxu0 0.0
  %252 = vmatpush2.msra.mxu0 0.0
  %253 = vmatprep.subr.mxu0 0.0
  %254 = vmatpush2.msra.mxu0 0.0
  %255 = vmatprep.subr.mxu0 0.0
  %256 = vmatpush2.msra.mxu0 0.0
  %257 = vmatprep.subr.mxu0 0.0
  %258 = vmatpush2.msra.mxu0 0.0
  %259 = vmatprep.subr.mxu0 0.0
  %260 = vmatpush2.msra.mxu0 0.0
  %261 = vmatprep.subr.mxu0 0.0
  %262 = vmatpush2.msra.mxu0 0.0
  %263 = vmatprep.subr.mxu0 0.0
  %264 = vmatpush2.msra.mxu0 0.0
  %265 = vmatprep.subr.mxu0 0.0
  %266 = vmatpush2.msra.mxu0 0.0
  %267 = vmatprep.subr.mxu0 0.0
  %268 = vmatpush2.msra.mxu0 0.0
  %269 = vmatprep.subr.mxu0 0.0
  %270 = vmatpush2.msra.mxu0 0.0
  %271 = vmatprep.mubr.f32.mxu0 0.0
  %272 = vmatmul.mubr.f32.gmra.mxu0 %v159
  %v273 = vpop.f32.mrf.mxu0
  %v274 = vadd.f32 0.0, %v273
  %v275 = vpop.f32.mrf.mxu0
  %v276 = vadd.f32 0.0, %v275
  %277 = vmatprep.mubr.f32.mxu0 0.0
  %278 = vmatmul.mubr.f32.gmra.mxu0 %v162
  %v279 = vpop.f32.mrf.mxu0
  %v280 = vadd.f32 0.0, %v279
  %v281 = vpop.f32.mrf.mxu0
  %v282 = vadd.f32 0.0, %v281
  %283 = vmatprep.mubr.f32.mxu0 0.0
  %284 = vmatmul.mubr.f32.gmra.mxu0 %v165
  %v285 = vpop.f32.mrf.mxu0
  %v286 = vadd.f32 0.0, %v285
  %v287 = vpop.f32.mrf.mxu0
  %v288 = vadd.f32 0.0, %v287
  %289 = vmatprep.mubr.f32.mxu0 0.0
  %290 = vmatmul.mubr.f32.gmra.mxu0 %v168
  %v291 = vpop.f32.mrf.mxu0
  %v292 = vadd.f32 0.0, %v291
  %v293 = vpop.f32.mrf.mxu0
  %v294 = vadd.f32 0.0, %v293
  %295 = vmatprep.mubr.f32.mxu0 0.0
  %296 = vmatmul.mubr.f32.gmra.mxu0 %v171
  %v297 = vpop.f32.mrf.mxu0
  %v298 = vadd.f32 0.0, %v297
  %v299 = vpop.f32.mrf.mxu0
  %v300 = vadd.f32 0.0, %v299
  %301 = vmatprep.mubr.f32.mxu0 0.0
  %302 = vmatmul.mubr.f32.gmra.mxu0 %v174
  %v303 = vpop.f32.mrf.mxu0
  %v304 = vadd.f32 0.0, %v303
  %v305 = vpop.f32.mrf.mxu0
  %v306 = vadd.f32 0.0, %v305
  %307 = vdwg.mxu0
  %308 = vmatprep.subr.mxu0 0.0
  %309 = vmatpush1.msra.mxu0 0.0
  %310 = vmatprep.subr.mxu0 0.0
  %311 = vmatpush1.msra.mxu0 0.0
  %312 = vmatprep.subr.mxu0 0.0
  %313 = vmatpush1.msra.mxu0 0.0
  %314 = vmatprep.subr.mxu0 0.0
  %315 = vmatpush1.msra.mxu0 0.0
  %316 = vmatprep.subr.mxu0 0.0
  %317 = vmatpush1.msra.mxu0 0.0
  %318 = vmatprep.subr.mxu0 0.0
  %319 = vmatpush1.msra.mxu0 0.0
  %320 = vmatprep.subr.mxu0 0.0
  %321 = vmatpush1.msra.mxu0 0.0
  %322 = vmatprep.subr.mxu0 0.0
  %323 = vmatpush1.msra.mxu0 0.0
  %324 = vmatprep.subr.mxu0 0.0
  %325 = vmatpush1.msra.mxu0 0.0
  %326 = vmatprep.subr.mxu0 0.0
  %327 = vmatpush1.msra.mxu0 0.0
  %328 = vmatprep.subr.mxu0 %v187
  %329 = vmatpush1.msra.mxu0 %v184
  %330 = vmatprep.subr.mxu0 %v140
  %331 = vmatpush1.msra.mxu0 %v139
  %332 = vmatprep.subr.mxu0 %v130
  %333 = vmatpush1.msra.mxu0 %v129
  %334 = vmatprep.subr.mxu0 %v120
  %335 = vmatpush1.msra.mxu0 %v119
  %336 = vmatprep.subr.mxu0 %v110
  %337 = vmatpush1.msra.mxu0 %v109
  %338 = vmatprep.subr.mxu0 %v100
  %339 = vmatpush1.msra.mxu0 %v99
  %340 = vmatprep.subr.mxu0 0.0
  %341 = vmatpush2.msra.mxu0 0.0
  %342 = vmatprep.subr.mxu0 0.0
  %343 = vmatpush2.msra.mxu0 0.0
  %344 = vmatprep.subr.mxu0 0.0
  %345 = vmatpush2.msra.mxu0 0.0
  %346 = vmatprep.subr.mxu0 0.0
  %347 = vmatpush2.msra.mxu0 0.0
  %348 = vmatprep.subr.mxu0 0.0
  %349 = vmatpush2.msra.mxu0 0.0
  %350 = vmatprep.subr.mxu0 0.0
  %351 = vmatpush2.msra.mxu0 0.0
  %352 = vmatprep.subr.mxu0 0.0
  %353 = vmatpush2.msra.mxu0 0.0
  %354 = vmatprep.subr.mxu0 0.0
  %355 = vmatpush2.msra.mxu0 0.0
  %356 = vmatprep.subr.mxu0 0.0
  %357 = vmatpush2.msra.mxu0 0.0
  %358 = vmatprep.subr.mxu0 0.0
  %359 = vmatpush2.msra.mxu0 0.0
  %360 = vmatprep.subr.mxu0 0.0
  %361 = vmatpush2.msra.mxu0 0.0
  %362 = vmatprep.subr.mxu0 0.0
  %363 = vmatpush2.msra.mxu0 0.0
  %364 = vmatprep.subr.mxu0 0.0
  %365 = vmatpush2.msra.mxu0 0.0
  %366 = vmatprep.subr.mxu0 0.0
  %367 = vmatpush2.msra.mxu0 0.0
  %368 = vmatprep.subr.mxu0 0.0
  %369 = vmatpush2.msra.mxu0 0.0
  %370 = vmatprep.subr.mxu0 0.0
  %371 = vmatpush2.msra.mxu0 0.0
  %372 = vmatprep.mubr.f32.mxu0 0.0
  %373 = vmatmul.mubr.f32.gmra.mxu0 %v159
  %v374 = vpop.f32.mrf.mxu0
  %v375 = vadd.f32 0.0, %v374
  %v376 = vpop.f32.mrf.mxu0
  %v377 = vadd.f32 0.0, %v376
  %378 = vmatprep.mubr.f32.mxu0 0.0
  %379 = vmatmul.mubr.f32.gmra.mxu0 %v162
  %v380 = vpop.f32.mrf.mxu0
  %v381 = vadd.f32 0.0, %v380
  %v382 = vpop.f32.mrf.mxu0
  %v383 = vadd.f32 0.0, %v382
  %384 = vmatprep.mubr.f32.mxu0 0.0
  %385 = vmatmul.mubr.f32.gmra.mxu0 %v165
  %v386 = vpop.f32.mrf.mxu0
  %v387 = vadd.f32 0.0, %v386
  %v388 = vpop.f32.mrf.mxu0
  %v389 = vadd.f32 0.0, %v388
  %390 = vmatprep.mubr.f32.mxu0 0.0
  %391 = vmatmul.mubr.f32.gmra.mxu0 %v168
  %v392 = vpop.f32.mrf.mxu0
  %v393 = vadd.f32 0.0, %v392
  %v394 = vpop.f32.mrf.mxu0
  %v395 = vadd.f32 0.0, %v394
  %396 = vmatprep.mubr.f32.mxu0 0.0
  %397 = vmatmul.mubr.f32.gmra.mxu0 %v171
  %v398 = vpop.f32.mrf.mxu0
  %v399 = vadd.f32 0.0, %v398
  %v400 = vpop.f32.mrf.mxu0
  %v401 = vadd.f32 0.0, %v400
  %402 = vmatprep.mubr.f32.mxu0 0.0
  %403 = vmatmul.mubr.f32.gmra.mxu0 %v174
  %v404 = vpop.f32.mrf.mxu0
  %v405 = vadd.f32 0.0, %v404
  %v406 = vpop.f32.mrf.mxu0
  %v407 = vadd.f32 0.0, %v406
  %408 = vdwg.mxu0
  %409 = vmatprep.subr.mxu0 0.0
  %410 = vmatpush1.msra.mxu0 0.0
  %411 = vmatprep.subr.mxu0 0.0
  %412 = vmatpush1.msra.mxu0 0.0
  %413 = vmatprep.subr.mxu0 0.0
  %414 = vmatpush1.msra.mxu0 0.0
  %415 = vmatprep.subr.mxu0 0.0
  %416 = vmatpush1.msra.mxu0 0.0
  %417 = vmatprep.subr.mxu0 0.0
  %418 = vmatpush1.msra.mxu0 0.0
  %419 = vmatprep.subr.mxu0 0.0
  %420 = vmatpush1.msra.mxu0 0.0
  %421 = vmatprep.subr.mxu0 0.0
  %422 = vmatpush1.msra.mxu0 0.0
  %423 = vmatprep.subr.mxu0 0.0
  %424 = vmatpush1.msra.mxu0 0.0
  %425 = vmatprep.subr.mxu0 0.0
  %426 = vmatpush1.msra.mxu0 0.0
  %427 = vmatprep.subr.mxu0 0.0
  %428 = vmatpush1.msra.mxu0 0.0
  %429 = vmatprep.subr.mxu0 %v193
  %430 = vmatpush1.msra.mxu0 %v190
  %431 = vmatprep.subr.mxu0 %v142
  %432 = vmatpush1.msra.mxu0 %v141
  %433 = vmatprep.subr.mxu0 %v132
  %434 = vmatpush1.msra.mxu0 %v131
  %435 = vmatprep.subr.mxu0 %v122
  %436 = vmatpush1.msra.mxu0 %v121
  %437 = vmatprep.subr.mxu0 %v112
  %438 = vmatpush1.msra.mxu0 %v111
  %439 = vmatprep.subr.mxu0 %v102
  %440 = vmatpush1.msra.mxu0 %v101
  %441 = vmatprep.subr.mxu0 0.0
  %442 = vmatpush2.msra.mxu0 0.0
  %443 = vmatprep.subr.mxu0 0.0
  %444 = vmatpush2.msra.mxu0 0.0
  %445 = vmatprep.subr.mxu0 0.0
  %446 = vmatpush2.msra.mxu0 0.0
  %447 = vmatprep.subr.mxu0 0.0
  %448 = vmatpush2.msra.mxu0 0.0
  %449 = vmatprep.subr.mxu0 0.0
  %450 = vmatpush2.msra.mxu0 0.0
  %451 = vmatprep.subr.mxu0 0.0
  %452 = vmatpush2.msra.mxu0 0.0
  %453 = vmatprep.subr.mxu0 0.0
  %454 = vmatpush2.msra.mxu0 0.0
  %455 = vmatprep.subr.mxu0 0.0
  %456 = vmatpush2.msra.mxu0 0.0
  %457 = vmatprep.subr.mxu0 0.0
  %458 = vmatpush2.msra.mxu0 0.0
  %459 = vmatprep.subr.mxu0 0.0
  %460 = vmatpush2.msra.mxu0 0.0
  %461 = vmatprep.subr.mxu0 0.0
  %462 = vmatpush2.msra.mxu0 0.0
  %463 = vmatprep.subr.mxu0 0.0
  %464 = vmatpush2.msra.mxu0 0.0
  %465 = vmatprep.subr.mxu0 0.0
  %466 = vmatpush2.msra.mxu0 0.0
  %467 = vmatprep.subr.mxu0 0.0
  %468 = vmatpush2.msra.mxu0 0.0
  %469 = vmatprep.subr.mxu0 0.0
  %470 = vmatpush2.msra.mxu0 0.0
  %471 = vmatprep.subr.mxu0 0.0
  %472 = vmatpush2.msra.mxu0 0.0
  %473 = vmatprep.mubr.f32.mxu0 0.0
  %474 = vmatmul.mubr.f32.gmra.mxu0 %v159
  %v475 = vpop.f32.mrf.mxu0
  %v476 = vadd.f32 0.0, %v475
  %v477 = vpop.f32.mrf.mxu0
  %v478 = vadd.f32 0.0, %v477
  %479 = vmatprep.mubr.f32.mxu0 0.0
  %480 = vmatmul.mubr.f32.gmra.mxu0 %v162
  %v481 = vpop.f32.mrf.mxu0
  %v482 = vadd.f32 0.0, %v481
  %v483 = vpop.f32.mrf.mxu0
  %v484 = vadd.f32 0.0, %v483
  %485 = vmatprep.mubr.f32.mxu0 0.0
  %486 = vmatmul.mubr.f32.gmra.mxu0 %v165
  %v487 = vpop.f32.mrf.mxu0
  %v488 = vadd.f32 0.0, %v487
  %v489 = vpop.f32.mrf.mxu0
  %v490 = vadd.f32 0.0, %v489
  %491 = vmatprep.mubr.f32.mxu0 0.0
  %492 = vmatmul.mubr.f32.gmra.mxu0 %v168
  %v493 = vpop.f32.mrf.mxu0
  %v494 = vadd.f32 0.0, %v493
  %v495 = vpop.f32.mrf.mxu0
  %v496 = vadd.f32 0.0, %v495
  %497 = vmatprep.mubr.f32.mxu0 0.0
  %498 = vmatmul.mubr.f32.gmra.mxu0 %v171
  %v499 = vpop.f32.mrf.mxu0
  %v500 = vadd.f32 0.0, %v499
  %v501 = vpop.f32.mrf.mxu0
  %v502 = vadd.f32 0.0, %v501
  %503 = vmatprep.mubr.f32.mxu0 0.0
  %504 = vmatmul.mubr.f32.gmra.mxu0 %v174
  %v505 = vpop.f32.mrf.mxu0
  %v506 = vadd.f32 0.0, %v505
  %v507 = vpop.f32.mrf.mxu0
  %v508 = vadd.f32 0.0, %v507
  %509 = vdwg.mxu0
  %510 = vmatprep.subr.mxu0 0.0
  %511 = vmatpush1.msra.mxu0 0.0
  %512 = vmatprep.subr.mxu0 0.0
  %513 = vmatpush1.msra.mxu0 0.0
  %514 = vmatprep.subr.mxu0 0.0
  %515 = vmatpush1.msra.mxu0 0.0
  %516 = vmatprep.subr.mxu0 0.0
  %517 = vmatpush1.msra.mxu0 0.0
  %518 = vmatprep.subr.mxu0 0.0
  %519 = vmatpush1.msra.mxu0 0.0
  %520 = vmatprep.subr.mxu0 0.0
  %521 = vmatpush1.msra.mxu0 0.0
  %522 = vmatprep.subr.mxu0 0.0
  %523 = vmatpush1.msra.mxu0 0.0
  %524 = vmatprep.subr.mxu0 0.0
  %525 = vmatpush1.msra.mxu0 0.0
  %526 = vmatprep.subr.mxu0 0.0
  %527 = vmatpush1.msra.mxu0 0.0
  %528 = vmatprep.subr.mxu0 0.0
  %529 = vmatpush1.msra.mxu0 0.0
  %530 = vmatprep.subr.mxu0 %v199
  %531 = vmatpush1.msra.mxu0 %v196
  %532 = vmatprep.subr.mxu0 %v144
  %533 = vmatpush1.msra.mxu0 %v143
  %534 = vmatprep.subr.mxu0 %v134
  %535 = vmatpush1.msra.mxu0 %v133
  %536 = vmatprep.subr.mxu0 %v124
  %537 = vmatpush1.msra.mxu0 %v123
  %538 = vmatprep.subr.mxu0 %v114
  %539 = vmatpush1.msra.mxu0 %v113
  %540 = vmatprep.subr.mxu0 %v104
  %541 = vmatpush1.msra.mxu0 %v103
  %542 = vmatprep.subr.mxu0 0.0
  %543 = vmatpush2.msra.mxu0 0.0
  %544 = vmatprep.subr.mxu0 0.0
  %545 = vmatpush2.msra.mxu0 0.0
  %546 = vmatprep.subr.mxu0 0.0
  %547 = vmatpush2.msra.mxu0 0.0
  %548 = vmatprep.subr.mxu0 0.0
  %549 = vmatpush2.msra.mxu0 0.0
  %550 = vmatprep.subr.mxu0 0.0
  %551 = vmatpush2.msra.mxu0 0.0
  %552 = vmatprep.subr.mxu0 0.0
  %553 = vmatpush2.msra.mxu0 0.0
  %554 = vmatprep.subr.mxu0 0.0
  %555 = vmatpush2.msra.mxu0 0.0
  %556 = vmatprep.subr.mxu0 0.0
  %557 = vmatpush2.msra.mxu0 0.0
  %558 = vmatprep.subr.mxu0 0.0
  %559 = vmatpush2.msra.mxu0 0.0
  %560 = vmatprep.subr.mxu0 0.0
  %561 = vmatpush2.msra.mxu0 0.0
  %562 = vmatprep.subr.mxu0 0.0
  %563 = vmatpush2.msra.mxu0 0.0
  %564 = vmatprep.subr.mxu0 0.0
  %565 = vmatpush2.msra.mxu0 0.0
  %566 = vmatprep.subr.mxu0 0.0
  %567 = vmatpush2.msra.mxu0 0.0
  %568 = vmatprep.subr.mxu0 0.0
  %569 = vmatpush2.msra.mxu0 0.0
  %570 = vmatprep.subr.mxu0 0.0
  %571 = vmatpush2.msra.mxu0 0.0
  %572 = vmatprep.subr.mxu0 0.0
  %573 = vmatpush2.msra.mxu0 0.0
  %574 = vmatprep.mubr.f32.mxu0 0.0
  %575 = vmatmul.mubr.f32.gmra.mxu0 %v159
  %v576 = vpop.f32.mrf.mxu0
  %v577 = vadd.f32 0.0, %v576
  %v578 = vpop.f32.mrf.mxu0
  %v579 = vadd.f32 0.0, %v578
  %580 = vmatprep.mubr.f32.mxu0 0.0
  %581 = vmatmul.mubr.f32.gmra.mxu0 %v162
  %v582 = vpop.f32.mrf.mxu0
  %v583 = vadd.f32 0.0, %v582
  %v584 = vpop.f32.mrf.mxu0
  %v585 = vadd.f32 0.0, %v584
  %586 = vmatprep.mubr.f32.mxu0 0.0
  %587 = vmatmul.mubr.f32.gmra.mxu0 %v165
  %v588 = vpop.f32.mrf.mxu0
  %v589 = vadd.f32 0.0, %v588
  %v590 = vpop.f32.mrf.mxu0
  %v591 = vadd.f32 0.0, %v590
  %592 = vmatprep.mubr.f32.mxu0 0.0
  %593 = vmatmul.mubr.f32.gmra.mxu0 %v168
  %v594 = vpop.f32.mrf.mxu0
  %v595 = vadd.f32 0.0, %v594
  %v596 = vpop.f32.mrf.mxu0
  %v597 = vadd.f32 0.0, %v596
  %598 = vmatprep.mubr.f32.mxu0 0.0
  %599 = vmatmul.mubr.f32.gmra.mxu0 %v171
  %v600 = vpop.f32.mrf.mxu0
  %v601 = vadd.f32 0.0, %v600
  %v602 = vpop.f32.mrf.mxu0
  %v603 = vadd.f32 0.0, %v602
  %604 = vmatprep.mubr.f32.mxu0 0.0
  %605 = vmatmul.mubr.f32.gmra.mxu0 %v174
  %v606 = vpop.f32.mrf.mxu0
  %v607 = vadd.f32 0.0, %v606
  %v608 = vpop.f32.mrf.mxu0
  %v609 = vadd.f32 0.0, %v608
  %610 = vdwg.mxu0
  %611 = vmatprep.subr.mxu0 0.0
  %612 = vmatpush1.msra.mxu0 0.0
  %613 = vmatprep.subr.mxu0 0.0
  %614 = vmatpush1.msra.mxu0 0.0
  %615 = vmatprep.subr.mxu0 0.0
  %616 = vmatpush1.msra.mxu0 0.0
  %617 = vmatprep.subr.mxu0 0.0
  %618 = vmatpush1.msra.mxu0 0.0
  %619 = vmatprep.subr.mxu0 0.0
  %620 = vmatpush1.msra.mxu0 0.0
  %621 = vmatprep.subr.mxu0 0.0
  %622 = vmatpush1.msra.mxu0 0.0
  %623 = vmatprep.subr.mxu0 0.0
  %624 = vmatpush1.msra.mxu0 0.0
  %625 = vmatprep.subr.mxu0 0.0
  %626 = vmatpush1.msra.mxu0 0.0
  %627 = vmatprep.subr.mxu0 0.0
  %628 = vmatpush1.msra.mxu0 0.0
  %629 = vmatprep.subr.mxu0 0.0
  %630 = vmatpush1.msra.mxu0 0.0
  %631 = vmatprep.subr.mxu0 %v205
  %632 = vmatpush1.msra.mxu0 %v202
  %633 = vmatprep.subr.mxu0 %v146
  %634 = vmatpush1.msra.mxu0 %v145
  %635 = vmatprep.subr.mxu0 %v136
  %636 = vmatpush1.msra.mxu0 %v135
  %637 = vmatprep.subr.mxu0 %v126
  %638 = vmatpush1.msra.mxu0 %v125
  %639 = vmatprep.subr.mxu0 %v116
  %640 = vmatpush1.msra.mxu0 %v115
  %641 = vmatprep.subr.mxu0 %v106
  %642 = vmatpush1.msra.mxu0 %v105
  %643 = vmatprep.subr.mxu0 0.0
  %644 = vmatpush2.msra.mxu0 0.0
  %645 = vmatprep.subr.mxu0 0.0
  %646 = vmatpush2.msra.mxu0 0.0
  %647 = vmatprep.subr.mxu0 0.0
  %648 = vmatpush2.msra.mxu0 0.0
  %649 = vmatprep.subr.mxu0 0.0
  %650 = vmatpush2.msra.mxu0 0.0
  %651 = vmatprep.subr.mxu0 0.0
  %652 = vmatpush2.msra.mxu0 0.0
  %653 = vmatprep.subr.mxu0 0.0
  %654 = vmatpush2.msra.mxu0 0.0
  %655 = vmatprep.subr.mxu0 0.0
  %656 = vmatpush2.msra.mxu0 0.0
  %657 = vmatprep.subr.mxu0 0.0
  %658 = vmatpush2.msra.mxu0 0.0
  %659 = vmatprep.subr.mxu0 0.0
  %660 = vmatpush2.msra.mxu0 0.0
  %661 = vmatprep.subr.mxu0 0.0
  %662 = vmatpush2.msra.mxu0 0.0
  %663 = vmatprep.subr.mxu0 0.0
  %664 = vmatpush2.msra.mxu0 0.0
  %665 = vmatprep.subr.mxu0 0.0
  %666 = vmatpush2.msra.mxu0 0.0
  %667 = vmatprep.subr.mxu0 0.0
  %668 = vmatpush2.msra.mxu0 0.0
  %669 = vmatprep.subr.mxu0 0.0
  %670 = vmatpush2.msra.mxu0 0.0
  %671 = vmatprep.subr.mxu0 0.0
  %672 = vmatpush2.msra.mxu0 0.0
  %673 = vmatprep.subr.mxu0 0.0
  %674 = vmatpush2.msra.mxu0 0.0
  %675 = vmatprep.mubr.f32.mxu0 0.0
  %676 = vmatmul.mubr.f32.gmra.mxu0 %v159
  %v677 = vpop.f32.mrf.mxu0
  %v678 = vadd.f32 0.0, %v677
  %v679 = vpop.f32.mrf.mxu0
  %v680 = vadd.f32 0.0, %v679
  %681 = vmatprep.mubr.f32.mxu0 0.0
  %682 = vmatmul.mubr.f32.gmra.mxu0 %v162
  %v683 = vpop.f32.mrf.mxu0
  %v684 = vadd.f32 0.0, %v683
  %v685 = vpop.f32.mrf.mxu0
  %v686 = vadd.f32 0.0, %v685
  %687 = vmatprep.mubr.f32.mxu0 0.0
  %688 = vmatmul.mubr.f32.gmra.mxu0 %v165
  %v689 = vpop.f32.mrf.mxu0
  %v690 = vadd.f32 0.0, %v689
  %v691 = vpop.f32.mrf.mxu0
  %v692 = vadd.f32 0.0, %v691
  %693 = vmatprep.mubr.f32.mxu0 0.0
  %694 = vmatmul.mubr.f32.gmra.mxu0 %v168
  %v695 = vpop.f32.mrf.mxu0
  %v696 = vadd.f32 0.0, %v695
  %v697 = vpop.f32.mrf.mxu0
  %v698 = vadd.f32 0.0, %v697
  %699 = vmatprep.mubr.f32.mxu0 0.0
  %700 = vmatmul.mubr.f32.gmra.mxu0 %v171
  %v701 = vpop.f32.mrf.mxu0
  %v702 = vadd.f32 0.0, %v701
  %v703 = vpop.f32.mrf.mxu0
  %v704 = vadd.f32 0.0, %v703
  %705 = vmatprep.mubr.f32.mxu0 0.0
  %706 = vmatmul.mubr.f32.gmra.mxu0 %v174
  %v707 = vpop.f32.mrf.mxu0
  %v708 = vadd.f32 0.0, %v707
  %v709 = vpop.f32.mrf.mxu0
  %v710 = vadd.f32 0.0, %v709
  %711 = vdwg.mxu0
  %v713 = vsel %vm157, %v23, 0
  %v716 = vsel %vm157, %v24, 0
  %v719 = vsel %vm157, %v25, 0
  %v722 = vsel %vm157, %v26, 0
  %v725 = vsel %vm157, %v27, 0
  %v728 = vsel %vm157, %v28, 0
  %v731 = vsel %vm176, %v79, 0
  %v734 = vsel %vm176, %v80, 0
  %v737 = vsel %vm176, %v81, 0
  %v740 = vsel %vm176, %v82, 0
  %v743 = vsel %vm176, %v83, 0
  %v746 = vsel %vm176, %v84, 0
  %v749 = vsel %vm176, %v85, 0
  %v752 = vsel %vm176, %v86, 0
  %v755 = vsel %vm176, %v87, 0
  %v758 = vsel %vm176, %v88, 0
  %760 = vmatprep.subr.mxu0 0.0
  %761 = vmatpush1.msra.mxu0 0.0
  %762 = vmatprep.subr.mxu0 0.0
  %763 = vmatpush1.msra.mxu0 0.0
  %764 = vmatprep.subr.mxu0 0.0
  %765 = vmatpush1.msra.mxu0 0.0
  %766 = vmatprep.subr.mxu0 0.0
  %767 = vmatpush1.msra.mxu0 0.0
  %768 = vmatprep.subr.mxu0 0.0
  %769 = vmatpush1.msra.mxu0 0.0
  %770 = vmatprep.subr.mxu0 0.0
  %771 = vmatpush1.msra.mxu0 0.0
  %772 = vmatprep.subr.mxu0 0.0
  %773 = vmatpush1.msra.mxu0 0.0
  %774 = vmatprep.subr.mxu0 0.0
  %775 = vmatpush1.msra.mxu0 0.0
  %776 = vmatprep.subr.mxu0 0.0
  %777 = vmatpush1.msra.mxu0 0.0
  %778 = vmatprep.subr.mxu0 0.0
  %779 = vmatpush1.msra.mxu0 0.0
  %780 = vmatprep.subr.mxu0 %v734
  %781 = vmatpush1.msra.mxu0 %v731
  %782 = vmatprep.subr.mxu0 %v70
  %783 = vmatpush1.msra.mxu0 %v69
  %784 = vmatprep.subr.mxu0 %v60
  %785 = vmatpush1.msra.mxu0 %v59
  %786 = vmatprep.subr.mxu0 %v50
  %787 = vmatpush1.msra.mxu0 %v49
  %788 = vmatprep.subr.mxu0 %v40
  %789 = vmatpush1.msra.mxu0 %v39
  %790 = vmatprep.subr.mxu0 %v30
  %791 = vmatpush1.msra.mxu0 %v29
  %792 = vmatprep.subr.mxu0 0.0
  %793 = vmatpush2.msra.mxu0 0.0
  %794 = vmatprep.subr.mxu0 0.0
  %795 = vmatpush2.msra.mxu0 0.0
  %796 = vmatprep.subr.mxu0 0.0
  %797 = vmatpush2.msra.mxu0 0.0
  %798 = vmatprep.subr.mxu0 0.0
  %799 = vmatpush2.msra.mxu0 0.0
  %800 = vmatprep.subr.mxu0 0.0
  %801 = vmatpush2.msra.mxu0 0.0
  %802 = vmatprep.subr.mxu0 0.0
  %803 = vmatpush2.msra.mxu0 0.0
  %804 = vmatprep.subr.mxu0 0.0
  %805 = vmatpush2.msra.mxu0 0.0
  %806 = vmatprep.subr.mxu0 0.0
  %807 = vmatpush2.msra.mxu0 0.0
  %808 = vmatprep.subr.mxu0 0.0
  %809 = vmatpush2.msra.mxu0 0.0
  %810 = vmatprep.subr.mxu0 0.0
  %811 = vmatpush2.msra.mxu0 0.0
  %812 = vmatprep.subr.mxu0 0.0
  %813 = vmatpush2.msra.mxu0 0.0
  %814 = vmatprep.subr.mxu0 0.0
  %815 = vmatpush2.msra.mxu0 0.0
  %816 = vmatprep.subr.mxu0 0.0
  %817 = vmatpush2.msra.mxu0 0.0
  %818 = vmatprep.subr.mxu0 0.0
  %819 = vmatpush2.msra.mxu0 0.0
  %820 = vmatprep.subr.mxu0 0.0
  %821 = vmatpush2.msra.mxu0 0.0
  %822 = vmatprep.subr.mxu0 0.0
  %823 = vmatpush2.msra.mxu0 0.0
  %824 = vmatprep.mubr.f32.mxu0 0.0
  %825 = vmatmul.mubr.f32.gmra.mxu0 %v713
  %v826 = vpop.f32.mrf.mxu0
  %v827 = vadd.f32 %v274, %v826
  %v828 = vpop.f32.mrf.mxu0
  %v829 = vadd.f32 %v276, %v828
  %830 = vmatprep.mubr.f32.mxu0 0.0
  %831 = vmatmul.mubr.f32.gmra.mxu0 %v716
  %v832 = vpop.f32.mrf.mxu0
  %v833 = vadd.f32 %v280, %v832
  %v834 = vpop.f32.mrf.mxu0
  %v835 = vadd.f32 %v282, %v834
  %836 = vmatprep.mubr.f32.mxu0 0.0
  %837 = vmatmul.mubr.f32.gmra.mxu0 %v719
  %v838 = vpop.f32.mrf.mxu0
  %v839 = vadd.f32 %v286, %v838
  %v840 = vpop.f32.mrf.mxu0
  %v841 = vadd.f32 %v288, %v840
  %842 = vmatprep.mubr.f32.mxu0 0.0
  %843 = vmatmul.mubr.f32.gmra.mxu0 %v722
  %v844 = vpop.f32.mrf.mxu0
  %v845 = vadd.f32 %v292, %v844
  %v846 = vpop.f32.mrf.mxu0
  %v847 = vadd.f32 %v294, %v846
  %848 = vmatprep.mubr.f32.mxu0 0.0
  %849 = vmatmul.mubr.f32.gmra.mxu0 %v725
  %v850 = vpop.f32.mrf.mxu0
  %v851 = vadd.f32 %v298, %v850
  %v852 = vpop.f32.mrf.mxu0
  %v853 = vadd.f32 %v300, %v852
  %854 = vmatprep.mubr.f32.mxu0 0.0
  %855 = vmatmul.mubr.f32.gmra.mxu0 %v728
  %v856 = vpop.f32.mrf.mxu0
  %v857 = vadd.f32 %v304, %v856
  %v858 = vpop.f32.mrf.mxu0
  %v859 = vadd.f32 %v306, %v858
  %860 = vdwg.mxu0
  %861 = vmatprep.subr.mxu0 0.0
  %862 = vmatpush1.msra.mxu0 0.0
  %863 = vmatprep.subr.mxu0 0.0
  %864 = vmatpush1.msra.mxu0 0.0
  %865 = vmatprep.subr.mxu0 0.0
  %866 = vmatpush1.msra.mxu0 0.0
  %867 = vmatprep.subr.mxu0 0.0
  %868 = vmatpush1.msra.mxu0 0.0
  %869 = vmatprep.subr.mxu0 0.0
  %870 = vmatpush1.msra.mxu0 0.0
  %871 = vmatprep.subr.mxu0 0.0
  %872 = vmatpush1.msra.mxu0 0.0
  %873 = vmatprep.subr.mxu0 0.0
  %874 = vmatpush1.msra.mxu0 0.0
  %875 = vmatprep.subr.mxu0 0.0
  %876 = vmatpush1.msra.mxu0 0.0
  %877 = vmatprep.subr.mxu0 0.0
  %878 = vmatpush1.msra.mxu0 0.0
  %879 = vmatprep.subr.mxu0 0.0
  %880 = vmatpush1.msra.mxu0 0.0
  %881 = vmatprep.subr.mxu0 %v740
  %882 = vmatpush1.msra.mxu0 %v737
  %883 = vmatprep.subr.mxu0 %v72
  %884 = vmatpush1.msra.mxu0 %v71
  %885 = vmatprep.subr.mxu0 %v62
  %886 = vmatpush1.msra.mxu0 %v61
  %887 = vmatprep.subr.mxu0 %v52
  %888 = vmatpush1.msra.mxu0 %v51
  %889 = vmatprep.subr.mxu0 %v42
  %890 = vmatpush1.msra.mxu0 %v41
  %891 = vmatprep.subr.mxu0 %v32
  %892 = vmatpush1.msra.mxu0 %v31
  %893 = vmatprep.subr.mxu0 0.0
  %894 = vmatpush2.msra.mxu0 0.0
  %895 = vmatprep.subr.mxu0 0.0
  %896 = vmatpush2.msra.mxu0 0.0
  %897 = vmatprep.subr.mxu0 0.0
  %898 = vmatpush2.msra.mxu0 0.0
  %899 = vmatprep.subr.mxu0 0.0
  %900 = vmatpush2.msra.mxu0 0.0
  %901 = vmatprep.subr.mxu0 0.0
  %902 = vmatpush2.msra.mxu0 0.0
  %903 = vmatprep.subr.mxu0 0.0
  %904 = vmatpush2.msra.mxu0 0.0
  %905 = vmatprep.subr.mxu0 0.0
  %906 = vmatpush2.msra.mxu0 0.0
  %907 = vmatprep.subr.mxu0 0.0
  %908 = vmatpush2.msra.mxu0 0.0
  %909 = vmatprep.subr.mxu0 0.0
  %910 = vmatpush2.msra.mxu0 0.0
  %911 = vmatprep.subr.mxu0 0.0
  %912 = vmatpush2.msra.mxu0 0.0
  %913 = vmatprep.subr.mxu0 0.0
  %914 = vmatpush2.msra.mxu0 0.0
  %915 = vmatprep.subr.mxu0 0.0
  %916 = vmatpush2.msra.mxu0 0.0
  %917 = vmatprep.subr.mxu0 0.0
  %918 = vmatpush2.msra.mxu0 0.0
  %919 = vmatprep.subr.mxu0 0.0
  %920 = vmatpush2.msra.mxu0 0.0
  %921 = vmatprep.subr.mxu0 0.0
  %922 = vmatpush2.msra.mxu0 0.0
  %923 = vmatprep.subr.mxu0 0.0
  %924 = vmatpush2.msra.mxu0 0.0
  %925 = vmatprep.mubr.f32.mxu0 0.0
  %926 = vmatmul.mubr.f32.gmra.mxu0 %v713
  %v927 = vpop.f32.mrf.mxu0
  %v928 = vadd.f32 %v375, %v927
  %v929 = vpop.f32.mrf.mxu0
  %v930 = vadd.f32 %v377, %v929
  %931 = vmatprep.mubr.f32.mxu0 0.0
  %932 = vmatmul.mubr.f32.gmra.mxu0 %v716
  %v933 = vpop.f32.mrf.mxu0
  %v934 = vadd.f32 %v381, %v933
  %v935 = vpop.f32.mrf.mxu0
  %v936 = vadd.f32 %v383, %v935
  %937 = vmatprep.mubr.f32.mxu0 0.0
  %938 = vmatmul.mubr.f32.gmra.mxu0 %v719
  %v939 = vpop.f32.mrf.mxu0
  %v940 = vadd.f32 %v387, %v939
  %v941 = vpop.f32.mrf.mxu0
  %v942 = vadd.f32 %v389, %v941
  %943 = vmatprep.mubr.f32.mxu0 0.0
  %944 = vmatmul.mubr.f32.gmra.mxu0 %v722
  %v945 = vpop.f32.mrf.mxu0
  %v946 = vadd.f32 %v393, %v945
  %v947 = vpop.f32.mrf.mxu0
  %v948 = vadd.f32 %v395, %v947
  %949 = vmatprep.mubr.f32.mxu0 0.0
  %950 = vmatmul.mubr.f32.gmra.mxu0 %v725
  %v951 = vpop.f32.mrf.mxu0
  %v952 = vadd.f32 %v399, %v951
  %v953 = vpop.f32.mrf.mxu0
  %v954 = vadd.f32 %v401, %v953
  %955 = vmatprep.mubr.f32.mxu0 0.0
  %956 = vmatmul.mubr.f32.gmra.mxu0 %v728
  %v957 = vpop.f32.mrf.mxu0
  %v958 = vadd.f32 %v405, %v957
  %v959 = vpop.f32.mrf.mxu0
  %v960 = vadd.f32 %v407, %v959
  %961 = vdwg.mxu0
  %962 = vmatprep.subr.mxu0 0.0
  %963 = vmatpush1.msra.mxu0 0.0
  %964 = vmatprep.subr.mxu0 0.0
  %965 = vmatpush1.msra.mxu0 0.0
  %966 = vmatprep.subr.mxu0 0.0
  %967 = vmatpush1.msra.mxu0 0.0
  %968 = vmatprep.subr.mxu0 0.0
  %969 = vmatpush1.msra.mxu0 0.0
  %970 = vmatprep.subr.mxu0 0.0
  %971 = vmatpush1.msra.mxu0 0.0
  %972 = vmatprep.subr.mxu0 0.0
  %973 = vmatpush1.msra.mxu0 0.0
  %974 = vmatprep.subr.mxu0 0.0
  %975 = vmatpush1.msra.mxu0 0.0
  %976 = vmatprep.subr.mxu0 0.0
  %977 = vmatpush1.msra.mxu0 0.0
  %978 = vmatprep.subr.mxu0 0.0
  %979 = vmatpush1.msra.mxu0 0.0
  %980 = vmatprep.subr.mxu0 0.0
  %981 = vmatpush1.msra.mxu0 0.0
  %982 = vmatprep.subr.mxu0 %v746
  %983 = vmatpush1.msra.mxu0 %v743
  %984 = vmatprep.subr.mxu0 %v74
  %985 = vmatpush1.msra.mxu0 %v73
  %986 = vmatprep.subr.mxu0 %v64
  %987 = vmatpush1.msra.mxu0 %v63
  %988 = vmatprep.subr.mxu0 %v54
  %989 = vmatpush1.msra.mxu0 %v53
  %990 = vmatprep.subr.mxu0 %v44
  %991 = vmatpush1.msra.mxu0 %v43
  %992 = vmatprep.subr.mxu0 %v34
  %993 = vmatpush1.msra.mxu0 %v33
  %994 = vmatprep.subr.mxu0 0.0
  %995 = vmatpush2.msra.mxu0 0.0
  %996 = vmatprep.subr.mxu0 0.0
  %997 = vmatpush2.msra.mxu0 0.0
  %998 = vmatprep.subr.mxu0 0.0
  %999 = vmatpush2.msra.mxu0 0.0
  %1000 = vmatprep.subr.mxu0 0.0
  %1001 = vmatpush2.msra.mxu0 0.0
  %1002 = vmatprep.subr.mxu0 0.0
  %1003 = vmatpush2.msra.mxu0 0.0
  %1004 = vmatprep.subr.mxu0 0.0
  %1005 = vmatpush2.msra.mxu0 0.0
  %1006 = vmatprep.subr.mxu0 0.0
  %1007 = vmatpush2.msra.mxu0 0.0
  %1008 = vmatprep.subr.mxu0 0.0
  %1009 = vmatpush2.msra.mxu0 0.0
  %1010 = vmatprep.subr.mxu0 0.0
  %1011 = vmatpush2.msra.mxu0 0.0
  %1012 = vmatprep.subr.mxu0 0.0
  %1013 = vmatpush2.msra.mxu0 0.0
  %1014 = vmatprep.subr.mxu0 0.0
  %1015 = vmatpush2.msra.mxu0 0.0
  %1016 = vmatprep.subr.mxu0 0.0
  %1017 = vmatpush2.msra.mxu0 0.0
  %1018 = vmatprep.subr.mxu0 0.0
  %1019 = vmatpush2.msra.mxu0 0.0
  %1020 = vmatprep.subr.mxu0 0.0
  %1021 = vmatpush2.msra.mxu0 0.0
  %1022 = vmatprep.subr.mxu0 0.0
  %1023 = vmatpush2.msra.mxu0 0.0
  %1024 = vmatprep.subr.mxu0 0.0
  %1025 = vmatpush2.msra.mxu0 0.0
  %1026 = vmatprep.mubr.f32.mxu0 0.0
  %1027 = vmatmul.mubr.f32.gmra.mxu0 %v713
  %v1028 = vpop.f32.mrf.mxu0
  %v1029 = vadd.f32 %v476, %v1028
  %v1030 = vpop.f32.mrf.mxu0
  %v1031 = vadd.f32 %v478, %v1030
  %1032 = vmatprep.mubr.f32.mxu0 0.0
  %1033 = vmatmul.mubr.f32.gmra.mxu0 %v716
  %v1034 = vpop.f32.mrf.mxu0
  %v1035 = vadd.f32 %v482, %v1034
  %v1036 = vpop.f32.mrf.mxu0
  %v1037 = vadd.f32 %v484, %v1036
  %1038 = vmatprep.mubr.f32.mxu0 0.0
  %1039 = vmatmul.mubr.f32.gmra.mxu0 %v719
  %v1040 = vpop.f32.mrf.mxu0
  %v1041 = vadd.f32 %v488, %v1040
  %v1042 = vpop.f32.mrf.mxu0
  %v1043 = vadd.f32 %v490, %v1042
  %1044 = vmatprep.mubr.f32.mxu0 0.0
  %1045 = vmatmul.mubr.f32.gmra.mxu0 %v722
  %v1046 = vpop.f32.mrf.mxu0
  %v1047 = vadd.f32 %v494, %v1046
  %v1048 = vpop.f32.mrf.mxu0
  %v1049 = vadd.f32 %v496, %v1048
  %1050 = vmatprep.mubr.f32.mxu0 0.0
  %1051 = vmatmul.mubr.f32.gmra.mxu0 %v725
  %v1052 = vpop.f32.mrf.mxu0
  %v1053 = vadd.f32 %v500, %v1052
  %v1054 = vpop.f32.mrf.mxu0
  %v1055 = vadd.f32 %v502, %v1054
  %1056 = vmatprep.mubr.f32.mxu0 0.0
  %1057 = vmatmul.mubr.f32.gmra.mxu0 %v728
  %v1058 = vpop.f32.mrf.mxu0
  %v1059 = vadd.f32 %v506, %v1058
  %v1060 = vpop.f32.mrf.mxu0
  %v1061 = vadd.f32 %v508, %v1060
  %1062 = vdwg.mxu0
  %1063 = vmatprep.subr.mxu0 0.0
  %1064 = vmatpush1.msra.mxu0 0.0
  %1065 = vmatprep.subr.mxu0 0.0
  %1066 = vmatpush1.msra.mxu0 0.0
  %1067 = vmatprep.subr.mxu0 0.0
  %1068 = vmatpush1.msra.mxu0 0.0
  %1069 = vmatprep.subr.mxu0 0.0
  %1070 = vmatpush1.msra.mxu0 0.0
  %1071 = vmatprep.subr.mxu0 0.0
  %1072 = vmatpush1.msra.mxu0 0.0
  %1073 = vmatprep.subr.mxu0 0.0
  %1074 = vmatpush1.msra.mxu0 0.0
  %1075 = vmatprep.subr.mxu0 0.0
  %1076 = vmatpush1.msra.mxu0 0.0
  %1077 = vmatprep.subr.mxu0 0.0
  %1078 = vmatpush1.msra.mxu0 0.0
  %1079 = vmatprep.subr.mxu0 0.0
  %1080 = vmatpush1.msra.mxu0 0.0
  %1081 = vmatprep.subr.mxu0 0.0
  %1082 = vmatpush1.msra.mxu0 0.0
  %1083 = vmatprep.subr.mxu0 %v752
  %1084 = vmatpush1.msra.mxu0 %v749
  %1085 = vmatprep.subr.mxu0 %v76
  %1086 = vmatpush1.msra.mxu0 %v75
  %1087 = vmatprep.subr.mxu0 %v66
  %1088 = vmatpush1.msra.mxu0 %v65
  %1089 = vmatprep.subr.mxu0 %v56
  %1090 = vmatpush1.msra.mxu0 %v55
  %1091 = vmatprep.subr.mxu0 %v46
  %1092 = vmatpush1.msra.mxu0 %v45
  %1093 = vmatprep.subr.mxu0 %v36
  %1094 = vmatpush1.msra.mxu0 %v35
  %1095 = vmatprep.subr.mxu0 0.0
  %1096 = vmatpush2.msra.mxu0 0.0
  %1097 = vmatprep.subr.mxu0 0.0
  %1098 = vmatpush2.msra.mxu0 0.0
  %1099 = vmatprep.subr.mxu0 0.0
  %1100 = vmatpush2.msra.mxu0 0.0
  %1101 = vmatprep.subr.mxu0 0.0
  %1102 = vmatpush2.msra.mxu0 0.0
  %1103 = vmatprep.subr.mxu0 0.0
  %1104 = vmatpush2.msra.mxu0 0.0
  %1105 = vmatprep.subr.mxu0 0.0
  %1106 = vmatpush2.msra.mxu0 0.0
  %1107 = vmatprep.subr.mxu0 0.0
  %1108 = vmatpush2.msra.mxu0 0.0
  %1109 = vmatprep.subr.mxu0 0.0
  %1110 = vmatpush2.msra.mxu0 0.0
  %1111 = vmatprep.subr.mxu0 0.0
  %1112 = vmatpush2.msra.mxu0 0.0
  %1113 = vmatprep.subr.mxu0 0.0
  %1114 = vmatpush2.msra.mxu0 0.0
  %1115 = vmatprep.subr.mxu0 0.0
  %1116 = vmatpush2.msra.mxu0 0.0
  %1117 = vmatprep.subr.mxu0 0.0
  %1118 = vmatpush2.msra.mxu0 0.0
  %1119 = vmatprep.subr.mxu0 0.0
  %1120 = vmatpush2.msra.mxu0 0.0
  %1121 = vmatprep.subr.mxu0 0.0
  %1122 = vmatpush2.msra.mxu0 0.0
  %1123 = vmatprep.subr.mxu0 0.0
  %1124 = vmatpush2.msra.mxu0 0.0
  %1125 = vmatprep.subr.mxu0 0.0
  %1126 = vmatpush2.msra.mxu0 0.0
  %1127 = vmatprep.mubr.f32.mxu0 0.0
  %1128 = vmatmul.mubr.f32.gmra.mxu0 %v713
  %v1129 = vpop.f32.mrf.mxu0
  %v1130 = vadd.f32 %v577, %v1129
  %v1131 = vpop.f32.mrf.mxu0
  %v1132 = vadd.f32 %v579, %v1131
  %1133 = vmatprep.mubr.f32.mxu0 0.0
  %1134 = vmatmul.mubr.f32.gmra.mxu0 %v716
  %v1135 = vpop.f32.mrf.mxu0
  %v1136 = vadd.f32 %v583, %v1135
  %v1137 = vpop.f32.mrf.mxu0
  %v1138 = vadd.f32 %v585, %v1137
  %1139 = vmatprep.mubr.f32.mxu0 0.0
  %1140 = vmatmul.mubr.f32.gmra.mxu0 %v719
  %v1141 = vpop.f32.mrf.mxu0
  %v1142 = vadd.f32 %v589, %v1141
  %v1143 = vpop.f32.mrf.mxu0
  %v1144 = vadd.f32 %v591, %v1143
  %1145 = vmatprep.mubr.f32.mxu0 0.0
  %1146 = vmatmul.mubr.f32.gmra.mxu0 %v722
  %v1147 = vpop.f32.mrf.mxu0
  %v1148 = vadd.f32 %v595, %v1147
  %v1149 = vpop.f32.mrf.mxu0
  %v1150 = vadd.f32 %v597, %v1149
  %1151 = vmatprep.mubr.f32.mxu0 0.0
  %1152 = vmatmul.mubr.f32.gmra.mxu0 %v725
  %v1153 = vpop.f32.mrf.mxu0
  %v1154 = vadd.f32 %v601, %v1153
  %v1155 = vpop.f32.mrf.mxu0
  %v1156 = vadd.f32 %v603, %v1155
  %1157 = vmatprep.mubr.f32.mxu0 0.0
  %1158 = vmatmul.mubr.f32.gmra.mxu0 %v728
  %v1159 = vpop.f32.mrf.mxu0
  %v1160 = vadd.f32 %v607, %v1159
  %v1161 = vpop.f32.mrf.mxu0
  %v1162 = vadd.f32 %v609, %v1161
  %1163 = vdwg.mxu0
  %1164 = vmatprep.subr.mxu0 0.0
  %1165 = vmatpush1.msra.mxu0 0.0
  %1166 = vmatprep.subr.mxu0 0.0
  %1167 = vmatpush1.msra.mxu0 0.0
  %1168 = vmatprep.subr.mxu0 0.0
  %1169 = vmatpush1.msra.mxu0 0.0
  %1170 = vmatprep.subr.mxu0 0.0
  %1171 = vmatpush1.msra.mxu0 0.0
  %1172 = vmatprep.subr.mxu0 0.0
  %1173 = vmatpush1.msra.mxu0 0.0
  %1174 = vmatprep.subr.mxu0 0.0
  %1175 = vmatpush1.msra.mxu0 0.0
  %1176 = vmatprep.subr.mxu0 0.0
  %1177 = vmatpush1.msra.mxu0 0.0
  %1178 = vmatprep.subr.mxu0 0.0
  %1179 = vmatpush1.msra.mxu0 0.0
  %1180 = vmatprep.subr.mxu0 0.0
  %1181 = vmatpush1.msra.mxu0 0.0
  %1182 = vmatprep.subr.mxu0 0.0
  %1183 = vmatpush1.msra.mxu0 0.0
  %1184 = vmatprep.subr.mxu0 %v758
  %1185 = vmatpush1.msra.mxu0 %v755
  %1186 = vmatprep.subr.mxu0 %v78
  %1187 = vmatpush1.msra.mxu0 %v77
  %1188 = vmatprep.subr.mxu0 %v68
  %1189 = vmatpush1.msra.mxu0 %v67
  %1190 = vmatprep.subr.mxu0 %v58
  %1191 = vmatpush1.msra.mxu0 %v57
  %1192 = vmatprep.subr.mxu0 %v48
  %1193 = vmatpush1.msra.mxu0 %v47
  %1194 = vmatprep.subr.mxu0 %v38
  %1195 = vmatpush1.msra.mxu0 %v37
  %1196 = vmatprep.subr.mxu0 0.0
  %1197 = vmatpush2.msra.mxu0 0.0
  %1198 = vmatprep.subr.mxu0 0.0
  %1199 = vmatpush2.msra.mxu0 0.0
  %1200 = vmatprep.subr.mxu0 0.0
  %1201 = vmatpush2.msra.mxu0 0.0
  %1202 = vmatprep.subr.mxu0 0.0
  %1203 = vmatpush2.msra.mxu0 0.0
  %1204 = vmatprep.subr.mxu0 0.0
  %1205 = vmatpush2.msra.mxu0 0.0
  %1206 = vmatprep.subr.mxu0 0.0
  %1207 = vmatpush2.msra.mxu0 0.0
  %1208 = vmatprep.subr.mxu0 0.0
  %1209 = vmatpush2.msra.mxu0 0.0
  %1210 = vmatprep.subr.mxu0 0.0
  %1211 = vmatpush2.msra.mxu0 0.0
  %1212 = vmatprep.subr.mxu0 0.0
  %1213 = vmatpush2.msra.mxu0 0.0
  %1214 = vmatprep.subr.mxu0 0.0
  %1215 = vmatpush2.msra.mxu0 0.0
  %1216 = vmatprep.subr.mxu0 0.0
  %1217 = vmatpush2.msra.mxu0 0.0
  %1218 = vmatprep.subr.mxu0 0.0
  %1219 = vmatpush2.msra.mxu0 0.0
  %1220 = vmatprep.subr.mxu0 0.0
  %1221 = vmatpush2.msra.mxu0 0.0
  %1222 = vmatprep.subr.mxu0 0.0
  %1223 = vmatpush2.msra.mxu0 0.0
  %1224 = vmatprep.subr.mxu0 0.0
  %1225 = vmatpush2.msra.mxu0 0.0
  %1226 = vmatprep.subr.mxu0 0.0
  %1227 = vmatpush2.msra.mxu0 0.0
  %1228 = vmatprep.mubr.f32.mxu0 0.0
  %1229 = vmatmul.mubr.f32.gmra.mxu0 %v713
  %v1230 = vpop.f32.mrf.mxu0
  %v1231 = vadd.f32 %v678, %v1230
  %v1232 = vpop.f32.mrf.mxu0
  %v1233 = vadd.f32 %v680, %v1232
  %1234 = vmatprep.mubr.f32.mxu0 0.0
  %1235 = vmatmul.mubr.f32.gmra.mxu0 %v716
  %v1236 = vpop.f32.mrf.mxu0
  %v1237 = vadd.f32 %v684, %v1236
  %v1238 = vpop.f32.mrf.mxu0
  %v1239 = vadd.f32 %v686, %v1238
  %1240 = vmatprep.mubr.f32.mxu0 0.0
  %1241 = vmatmul.mubr.f32.gmra.mxu0 %v719
  %v1242 = vpop.f32.mrf.mxu0
  %v1243 = vadd.f32 %v690, %v1242
  %v1244 = vpop.f32.mrf.mxu0
  %v1245 = vadd.f32 %v692, %v1244
  %1246 = vmatprep.mubr.f32.mxu0 0.0
  %1247 = vmatmul.mubr.f32.gmra.mxu0 %v722
  %v1248 = vpop.f32.mrf.mxu0
  %v1249 = vadd.f32 %v696, %v1248
  %v1250 = vpop.f32.mrf.mxu0
  %v1251 = vadd.f32 %v698, %v1250
  %1252 = vmatprep.mubr.f32.mxu0 0.0
  %1253 = vmatmul.mubr.f32.gmra.mxu0 %v725
  %v1254 = vpop.f32.mrf.mxu0
  %v1255 = vadd.f32 %v702, %v1254
  %v1256 = vpop.f32.mrf.mxu0
  %v1257 = vadd.f32 %v704, %v1256
  %1258 = vmatprep.mubr.f32.mxu0 0.0
  %1259 = vmatmul.mubr.f32.gmra.mxu0 %v728
  %v1260 = vpop.f32.mrf.mxu0
  %v1261 = vadd.f32 %v708, %v1260
  %v1262 = vpop.f32.mrf.mxu0
  %v1263 = vadd.f32 %v710, %v1262
  %1264 = vdwg.mxu0
  %v1265 = vld [vmem:[%s3] sm:$0xff]
  %v1266 = vld [vmem:[%s3 + $0x8] sm:$0xff]
  %v1267 = vld [vmem:[%s3 + $0x10] sm:$0xff]
  %v1268 = vld [vmem:[%s3 + $0x18] sm:$0xff]
  %v1269 = vld [vmem:[%s3 + $0x20] sm:$0x1f]
  %v1270 = vld [vmem:[%s3 + $0x28] sm:$0x1f]
  %v1271 = vld [vmem:[%s2] sm:$0xff]
  %v1272 = vld [vmem:[%s2 + $0x8] sm:$0xff]
  %v1273 = vld [vmem:[%s2 + $0x10] sm:$0x1f]
  %v1275 = vsel %vm157, %v1271, 0
  %v1278 = vsel %vm157, %v1272, 0
  %v1281 = vsel %vm157, %v1273, 0
  %v1284 = vsel %vm176, %v857, 0
  %v1287 = vsel %vm176, %v859, 0
  %1289 = vmatprep.subr.mxu0 0.0
  %1290 = vmatpush1.msra.mxu0 0.0
  %1291 = vmatprep.subr.mxu0 0.0
  %1292 = vmatpush1.msra.mxu0 0.0
  %1293 = vmatprep.subr.mxu0 0.0
  %1294 = vmatpush1.msra.mxu0 0.0
  %1295 = vmatprep.subr.mxu0 0.0
  %1296 = vmatpush1.msra.mxu0 0.0
  %1297 = vmatprep.subr.mxu0 0.0
  %1298 = vmatpush1.msra.mxu0 0.0
  %1299 = vmatprep.subr.mxu0 0.0
  %1300 = vmatpush1.msra.mxu0 0.0
  %1301 = vmatprep.subr.mxu0 0.0
  %1302 = vmatpush1.msra.mxu0 0.0
  %1303 = vmatprep.subr.mxu0 0.0
  %1304 = vmatpush1.msra.mxu0 0.0
  %1305 = vmatprep.subr.mxu0 0.0
  %1306 = vmatpush1.msra.mxu0 0.0
  %1307 = vmatprep.subr.mxu0 0.0
  %1308 = vmatpush1.msra.mxu0 0.0
  %1309 = vmatprep.subr.mxu0 %v1287
  %1310 = vmatpush1.msra.mxu0 %v1284
  %1311 = vmatprep.subr.mxu0 %v853
  %1312 = vmatpush1.msra.mxu0 %v851
  %1313 = vmatprep.subr.mxu0 %v847
  %1314 = vmatpush1.msra.mxu0 %v845
  %1315 = vmatprep.subr.mxu0 %v841
  %1316 = vmatpush1.msra.mxu0 %v839
  %1317 = vmatprep.subr.mxu0 %v835
  %1318 = vmatpush1.msra.mxu0 %v833
  %1319 = vmatprep.subr.mxu0 %v829
  %1320 = vmatpush1.msra.mxu0 %v827
  %1321 = vmatprep.subr.mxu0 0.0
  %1322 = vmatpush2.msra.mxu0 0.0
  %1323 = vmatprep.subr.mxu0 0.0
  %1324 = vmatpush2.msra.mxu0 0.0
  %1325 = vmatprep.subr.mxu0 0.0
  %1326 = vmatpush2.msra.mxu0 0.0
  %1327 = vmatprep.subr.mxu0 0.0
  %1328 = vmatpush2.msra.mxu0 0.0
  %1329 = vmatprep.subr.mxu0 0.0
  %1330 = vmatpush2.msra.mxu0 0.0
  %1331 = vmatprep.subr.mxu0 0.0
  %1332 = vmatpush2.msra.mxu0 0.0
  %1333 = vmatprep.subr.mxu0 0.0
  %1334 = vmatpush2.msra.mxu0 0.0
  %1335 = vmatprep.subr.mxu0 0.0
  %1336 = vmatpush2.msra.mxu0 0.0
  %1337 = vmatprep.subr.mxu0 0.0
  %1338 = vmatpush2.msra.mxu0 0.0
  %1339 = vmatprep.subr.mxu0 0.0
  %1340 = vmatpush2.msra.mxu0 0.0
  %1341 = vmatprep.subr.mxu0 0.0
  %1342 = vmatpush2.msra.mxu0 0.0
  %1343 = vmatprep.subr.mxu0 0.0
  %1344 = vmatpush2.msra.mxu0 0.0
  %1345 = vmatprep.subr.mxu0 0.0
  %1346 = vmatpush2.msra.mxu0 0.0
  %1347 = vmatprep.subr.mxu0 0.0
  %1348 = vmatpush2.msra.mxu0 0.0
  %1349 = vmatprep.subr.mxu0 0.0
  %1350 = vmatpush2.msra.mxu0 0.0
  %1351 = vmatprep.subr.mxu0 0.0
  %1352 = vmatpush2.msra.mxu0 0.0
  %1353 = vmatprep.mubr.f32.mxu0 0.0
  %1354 = vmatmul.mubr.f32.gmra.mxu0 %v1275
  %v1355 = vpop.f32.mrf.mxu0
  %v1356 = vadd.f32 0.0, %v1355
  %v1357 = vpop.f32.mrf.mxu0
  %v1358 = vadd.f32 0.0, %v1357
  %1359 = vmatprep.mubr.f32.mxu0 0.0
  %1360 = vmatmul.mubr.f32.gmra.mxu0 %v1278
  %v1361 = vpop.f32.mrf.mxu0
  %v1362 = vadd.f32 0.0, %v1361
  %v1363 = vpop.f32.mrf.mxu0
  %v1364 = vadd.f32 0.0, %v1363
  %1365 = vmatprep.mubr.f32.mxu0 0.0
  %1366 = vmatmul.mubr.f32.gmra.mxu0 %v1281
  %v1367 = vpop.f32.mrf.mxu0
  %v1368 = vadd.f32 0.0, %v1367
  %v1369 = vpop.f32.mrf.mxu0
  %v1370 = vadd.f32 0.0, %v1369
  %1371 = vdwg.mxu0
  %v1372 = vadd.f32 %v1265, %v1356
  %v1373 = vadd.f32 %v1266, %v1358
  %v1374 = vadd.f32 %v1267, %v1362
  %v1375 = vadd.f32 %v1268, %v1364
  %v1376 = vadd.f32 %v1269, %v1368
  %v1377 = vadd.f32 %v1270, %v1370
  %s1378 = scalar_lea.vmem %s2, 24
  %v1379 = vld [vmem:[%s1378] sm:$0xff]
  %v1380 = vld [vmem:[%s1378 + $0x8] sm:$0xff]
  %v1381 = vld [vmem:[%s1378 + $0x10] sm:$0x1f]
  %v1383 = vsel %vm157, %v1379, 0
  %v1386 = vsel %vm157, %v1380, 0
  %v1389 = vsel %vm157, %v1381, 0
  %v1392 = vsel %vm176, %v958, 0
  %v1395 = vsel %vm176, %v960, 0
  %1397 = vmatprep.subr.mxu0 0.0
  %1398 = vmatpush1.msra.mxu0 0.0
  %1399 = vmatprep.subr.mxu0 0.0
  %1400 = vmatpush1.msra.mxu0 0.0
  %1401 = vmatprep.subr.mxu0 0.0
  %1402 = vmatpush1.msra.mxu0 0.0
  %1403 = vmatprep.subr.mxu0 0.0
  %1404 = vmatpush1.msra.mxu0 0.0
  %1405 = vmatprep.subr.mxu0 0.0
  %1406 = vmatpush1.msra.mxu0 0.0
  %1407 = vmatprep.subr.mxu0 0.0
  %1408 = vmatpush1.msra.mxu0 0.0
  %1409 = vmatprep.subr.mxu0 0.0
  %1410 = vmatpush1.msra.mxu0 0.0
  %1411 = vmatprep.subr.mxu0 0.0
  %1412 = vmatpush1.msra.mxu0 0.0
  %1413 = vmatprep.subr.mxu0 0.0
  %1414 = vmatpush1.msra.mxu0 0.0
  %1415 = vmatprep.subr.mxu0 0.0
  %1416 = vmatpush1.msra.mxu0 0.0
  %1417 = vmatprep.subr.mxu0 %v1395
  %1418 = vmatpush1.msra.mxu0 %v1392
  %1419 = vmatprep.subr.mxu0 %v954
  %1420 = vmatpush1.msra.mxu0 %v952
  %1421 = vmatprep.subr.mxu0 %v948
  %1422 = vmatpush1.msra.mxu0 %v946
  %1423 = vmatprep.subr.mxu0 %v942
  %1424 = vmatpush1.msra.mxu0 %v940
  %1425 = vmatprep.subr.mxu0 %v936
  %1426 = vmatpush1.msra.mxu0 %v934
  %1427 = vmatprep.subr.mxu0 %v930
  %1428 = vmatpush1.msra.mxu0 %v928
  %1429 = vmatprep.subr.mxu0 0.0
  %1430 = vmatpush2.msra.mxu0 0.0
  %1431 = vmatprep.subr.mxu0 0.0
  %1432 = vmatpush2.msra.mxu0 0.0
  %1433 = vmatprep.subr.mxu0 0.0
  %1434 = vmatpush2.msra.mxu0 0.0
  %1435 = vmatprep.subr.mxu0 0.0
  %1436 = vmatpush2.msra.mxu0 0.0
  %1437 = vmatprep.subr.mxu0 0.0
  %1438 = vmatpush2.msra.mxu0 0.0
  %1439 = vmatprep.subr.mxu0 0.0
  %1440 = vmatpush2.msra.mxu0 0.0
  %1441 = vmatprep.subr.mxu0 0.0
  %1442 = vmatpush2.msra.mxu0 0.0
  %1443 = vmatprep.subr.mxu0 0.0
  %1444 = vmatpush2.msra.mxu0 0.0
  %1445 = vmatprep.subr.mxu0 0.0
  %1446 = vmatpush2.msra.mxu0 0.0
  %1447 = vmatprep.subr.mxu0 0.0
  %1448 = vmatpush2.msra.mxu0 0.0
  %1449 = vmatprep.subr.mxu0 0.0
  %1450 = vmatpush2.msra.mxu0 0.0
  %1451 = vmatprep.subr.mxu0 0.0
  %1452 = vmatpush2.msra.mxu0 0.0
  %1453 = vmatprep.subr.mxu0 0.0
  %1454 = vmatpush2.msra.mxu0 0.0
  %1455 = vmatprep.subr.mxu0 0.0
  %1456 = vmatpush2.msra.mxu0 0.0
  %1457 = vmatprep.subr.mxu0 0.0
  %1458 = vmatpush2.msra.mxu0 0.0
  %1459 = vmatprep.subr.mxu0 0.0
  %1460 = vmatpush2.msra.mxu0 0.0
  %1461 = vmatprep.mubr.f32.mxu0 0.0
  %1462 = vmatmul.mubr.f32.gmra.mxu0 %v1383
  %v1463 = vpop.f32.mrf.mxu0
  %v1464 = vadd.f32 0.0, %v1463
  %v1465 = vpop.f32.mrf.mxu0
  %v1466 = vadd.f32 0.0, %v1465
  %1467 = vmatprep.mubr.f32.mxu0 0.0
  %1468 = vmatmul.mubr.f32.gmra.mxu0 %v1386
  %v1469 = vpop.f32.mrf.mxu0
  %v1470 = vadd.f32 0.0, %v1469
  %v1471 = vpop.f32.mrf.mxu0
  %v1472 = vadd.f32 0.0, %v1471
  %1473 = vmatprep.mubr.f32.mxu0 0.0
  %1474 = vmatmul.mubr.f32.gmra.mxu0 %v1389
  %v1475 = vpop.f32.mrf.mxu0
  %v1476 = vadd.f32 0.0, %v1475
  %v1477 = vpop.f32.mrf.mxu0
  %v1478 = vadd.f32 0.0, %v1477
  %1479 = vdwg.mxu0
  %v1480 = vadd.f32 %v1372, %v1464
  %v1481 = vadd.f32 %v1373, %v1466
  %v1482 = vadd.f32 %v1374, %v1470
  %v1483 = vadd.f32 %v1375, %v1472
  %v1484 = vadd.f32 %v1376, %v1476
  %v1485 = vadd.f32 %v1377, %v1478
  %s1486 = scalar_lea.vmem %s2, 48
  %v1487 = vld [vmem:[%s1486] sm:$0xff]
  %v1488 = vld [vmem:[%s1486 + $0x8] sm:$0xff]
  %v1489 = vld [vmem:[%s1486 + $0x10] sm:$0x1f]
  %v1491 = vsel %vm157, %v1487, 0
  %v1494 = vsel %vm157, %v1488, 0
  %v1497 = vsel %vm157, %v1489, 0
  %v1500 = vsel %vm176, %v1059, 0
  %v1503 = vsel %vm176, %v1061, 0
  %1505 = vmatprep.subr.mxu0 0.0
  %1506 = vmatpush1.msra.mxu0 0.0
  %1507 = vmatprep.subr.mxu0 0.0
  %1508 = vmatpush1.msra.mxu0 0.0
  %1509 = vmatprep.subr.mxu0 0.0
  %1510 = vmatpush1.msra.mxu0 0.0
  %1511 = vmatprep.subr.mxu0 0.0
  %1512 = vmatpush1.msra.mxu0 0.0
  %1513 = vmatprep.subr.mxu0 0.0
  %1514 = vmatpush1.msra.mxu0 0.0
  %1515 = vmatprep.subr.mxu0 0.0
  %1516 = vmatpush1.msra.mxu0 0.0
  %1517 = vmatprep.subr.mxu0 0.0
  %1518 = vmatpush1.msra.mxu0 0.0
  %1519 = vmatprep.subr.mxu0 0.0
  %1520 = vmatpush1.msra.mxu0 0.0
  %1521 = vmatprep.subr.mxu0 0.0
  %1522 = vmatpush1.msra.mxu0 0.0
  %1523 = vmatprep.subr.mxu0 0.0
  %1524 = vmatpush1.msra.mxu0 0.0
  %1525 = vmatprep.subr.mxu0 %v1503
  %1526 = vmatpush1.msra.mxu0 %v1500
  %1527 = vmatprep.subr.mxu0 %v1055
  %1528 = vmatpush1.msra.mxu0 %v1053
  %1529 = vmatprep.subr.mxu0 %v1049
  %1530 = vmatpush1.msra.mxu0 %v1047
  %1531 = vmatprep.subr.mxu0 %v1043
  %1532 = vmatpush1.msra.mxu0 %v1041
  %1533 = vmatprep.subr.mxu0 %v1037
  %1534 = vmatpush1.msra.mxu0 %v1035
  %1535 = vmatprep.subr.mxu0 %v1031
  %1536 = vmatpush1.msra.mxu0 %v1029
  %1537 = vmatprep.subr.mxu0 0.0
  %1538 = vmatpush2.msra.mxu0 0.0
  %1539 = vmatprep.subr.mxu0 0.0
  %1540 = vmatpush2.msra.mxu0 0.0
  %1541 = vmatprep.subr.mxu0 0.0
  %1542 = vmatpush2.msra.mxu0 0.0
  %1543 = vmatprep.subr.mxu0 0.0
  %1544 = vmatpush2.msra.mxu0 0.0
  %1545 = vmatprep.subr.mxu0 0.0
  %1546 = vmatpush2.msra.mxu0 0.0
  %1547 = vmatprep.subr.mxu0 0.0
  %1548 = vmatpush2.msra.mxu0 0.0
  %1549 = vmatprep.subr.mxu0 0.0
  %1550 = vmatpush2.msra.mxu0 0.0
  %1551 = vmatprep.subr.mxu0 0.0
  %1552 = vmatpush2.msra.mxu0 0.0
  %1553 = vmatprep.subr.mxu0 0.0
  %1554 = vmatpush2.msra.mxu0 0.0
  %1555 = vmatprep.subr.mxu0 0.0
  %1556 = vmatpush2.msra.mxu0 0.0
  %1557 = vmatprep.subr.mxu0 0.0
  %1558 = vmatpush2.msra.mxu0 0.0
  %1559 = vmatprep.subr.mxu0 0.0
  %1560 = vmatpush2.msra.mxu0 0.0
  %1561 = vmatprep.subr.mxu0 0.0
  %1562 = vmatpush2.msra.mxu0 0.0
  %1563 = vmatprep.subr.mxu0 0.0
  %1564 = vmatpush2.msra.mxu0 0.0
  %1565 = vmatprep.subr.mxu0 0.0
  %1566 = vmatpush2.msra.mxu0 0.0
  %1567 = vmatprep.subr.mxu0 0.0
  %1568 = vmatpush2.msra.mxu0 0.0
  %1569 = vmatprep.mubr.f32.mxu0 0.0
  %1570 = vmatmul.mubr.f32.gmra.mxu0 %v1491
  %v1571 = vpop.f32.mrf.mxu0
  %v1572 = vadd.f32 0.0, %v1571
  %v1573 = vpop.f32.mrf.mxu0
  %v1574 = vadd.f32 0.0, %v1573
  %1575 = vmatprep.mubr.f32.mxu0 0.0
  %1576 = vmatmul.mubr.f32.gmra.mxu0 %v1494
  %v1577 = vpop.f32.mrf.mxu0
  %v1578 = vadd.f32 0.0, %v1577
  %v1579 = vpop.f32.mrf.mxu0
  %v1580 = vadd.f32 0.0, %v1579
  %1581 = vmatprep.mubr.f32.mxu0 0.0
  %1582 = vmatmul.mubr.f32.gmra.mxu0 %v1497
  %v1583 = vpop.f32.mrf.mxu0
  %v1584 = vadd.f32 0.0, %v1583
  %v1585 = vpop.f32.mrf.mxu0
  %v1586 = vadd.f32 0.0, %v1585
  %1587 = vdwg.mxu0
  %v1588 = vadd.f32 %v1480, %v1572
  %v1589 = vadd.f32 %v1481, %v1574
  %v1590 = vadd.f32 %v1482, %v1578
  %v1591 = vadd.f32 %v1483, %v1580
  %v1592 = vadd.f32 %v1484, %v1584
  %v1593 = vadd.f32 %v1485, %v1586
  %s1594 = scalar_lea.vmem %s2, 72
  %v1595 = vld [vmem:[%s1594] sm:$0xff]
  %v1596 = vld [vmem:[%s1594 + $0x8] sm:$0xff]
  %v1597 = vld [vmem:[%s1594 + $0x10] sm:$0x1f]
  %v1599 = vsel %vm157, %v1595, 0
  %v1602 = vsel %vm157, %v1596, 0
  %v1605 = vsel %vm157, %v1597, 0
  %v1608 = vsel %vm176, %v1160, 0
  %v1611 = vsel %vm176, %v1162, 0
  %1613 = vmatprep.subr.mxu0 0.0
  %1614 = vmatpush1.msra.mxu0 0.0
  %1615 = vmatprep.subr.mxu0 0.0
  %1616 = vmatpush1.msra.mxu0 0.0
  %1617 = vmatprep.subr.mxu0 0.0
  %1618 = vmatpush1.msra.mxu0 0.0
  %1619 = vmatprep.subr.mxu0 0.0
  %1620 = vmatpush1.msra.mxu0 0.0
  %1621 = vmatprep.subr.mxu0 0.0
  %1622 = vmatpush1.msra.mxu0 0.0
  %1623 = vmatprep.subr.mxu0 0.0
  %1624 = vmatpush1.msra.mxu0 0.0
  %1625 = vmatprep.subr.mxu0 0.0
  %1626 = vmatpush1.msra.mxu0 0.0
  %1627 = vmatprep.subr.mxu0 0.0
  %1628 = vmatpush1.msra.mxu0 0.0
  %1629 = vmatprep.subr.mxu0 0.0
  %1630 = vmatpush1.msra.mxu0 0.0
  %1631 = vmatprep.subr.mxu0 0.0
  %1632 = vmatpush1.msra.mxu0 0.0
  %1633 = vmatprep.subr.mxu0 %v1611
  %1634 = vmatpush1.msra.mxu0 %v1608
  %1635 = vmatprep.subr.mxu0 %v1156
  %1636 = vmatpush1.msra.mxu0 %v1154
  %1637 = vmatprep.subr.mxu0 %v1150
  %1638 = vmatpush1.msra.mxu0 %v1148
  %1639 = vmatprep.subr.mxu0 %v1144
  %1640 = vmatpush1.msra.mxu0 %v1142
  %1641 = vmatprep.subr.mxu0 %v1138
  %1642 = vmatpush1.msra.mxu0 %v1136
  %1643 = vmatprep.subr.mxu0 %v1132
  %1644 = vmatpush1.msra.mxu0 %v1130
  %1645 = vmatprep.subr.mxu0 0.0
  %1646 = vmatpush2.msra.mxu0 0.0
  %1647 = vmatprep.subr.mxu0 0.0
  %1648 = vmatpush2.msra.mxu0 0.0
  %1649 = vmatprep.subr.mxu0 0.0
  %1650 = vmatpush2.msra.mxu0 0.0
  %1651 = vmatprep.subr.mxu0 0.0
  %1652 = vmatpush2.msra.mxu0 0.0
  %1653 = vmatprep.subr.mxu0 0.0
  %1654 = vmatpush2.msra.mxu0 0.0
  %1655 = vmatprep.subr.mxu0 0.0
  %1656 = vmatpush2.msra.mxu0 0.0
  %1657 = vmatprep.subr.mxu0 0.0
  %1658 = vmatpush2.msra.mxu0 0.0
  %1659 = vmatprep.subr.mxu0 0.0
  %1660 = vmatpush2.msra.mxu0 0.0
  %1661 = vmatprep.subr.mxu0 0.0
  %1662 = vmatpush2.msra.mxu0 0.0
  %1663 = vmatprep.subr.mxu0 0.0
  %1664 = vmatpush2.msra.mxu0 0.0
  %1665 = vmatprep.subr.mxu0 0.0
  %1666 = vmatpush2.msra.mxu0 0.0
  %1667 = vmatprep.subr.mxu0 0.0
  %1668 = vmatpush2.msra.mxu0 0.0
  %1669 = vmatprep.subr.mxu0 0.0
  %1670 = vmatpush2.msra.mxu0 0.0
  %1671 = vmatprep.subr.mxu0 0.0
  %1672 = vmatpush2.msra.mxu0 0.0
  %1673 = vmatprep.subr.mxu0 0.0
  %1674 = vmatpush2.msra.mxu0 0.0
  %1675 = vmatprep.subr.mxu0 0.0
  %1676 = vmatpush2.msra.mxu0 0.0
  %1677 = vmatprep.mubr.f32.mxu0 0.0
  %1678 = vmatmul.mubr.f32.gmra.mxu0 %v1599
  %v1679 = vpop.f32.mrf.mxu0
  %v1680 = vadd.f32 0.0, %v1679
  %v1681 = vpop.f32.mrf.mxu0
  %v1682 = vadd.f32 0.0, %v1681
  %1683 = vmatprep.mubr.f32.mxu0 0.0
  %1684 = vmatmul.mubr.f32.gmra.mxu0 %v1602
  %v1685 = vpop.f32.mrf.mxu0
  %v1686 = vadd.f32 0.0, %v1685
  %v1687 = vpop.f32.mrf.mxu0
  %v1688 = vadd.f32 0.0, %v1687
  %1689 = vmatprep.mubr.f32.mxu0 0.0
  %1690 = vmatmul.mubr.f32.gmra.mxu0 %v1605
  %v1691 = vpop.f32.mrf.mxu0
  %v1692 = vadd.f32 0.0, %v1691
  %v1693 = vpop.f32.mrf.mxu0
  %v1694 = vadd.f32 0.0, %v1693
  %1695 = vdwg.mxu0
  %v1696 = vadd.f32 %v1588, %v1680
  %v1697 = vadd.f32 %v1589, %v1682
  %v1698 = vadd.f32 %v1590, %v1686
  %v1699 = vadd.f32 %v1591, %v1688
  %v1700 = vadd.f32 %v1592, %v1692
  %v1701 = vadd.f32 %v1593, %v1694
  %s1702 = scalar_lea.vmem %s2, 96
  %v1703 = vld [vmem:[%s1702] sm:$0xff]
  %v1704 = vld [vmem:[%s1702 + $0x8] sm:$0xff]
  %v1705 = vld [vmem:[%s1702 + $0x10] sm:$0x1f]
  %v1707 = vsel %vm157, %v1703, 0
  %v1710 = vsel %vm157, %v1704, 0
  %v1713 = vsel %vm157, %v1705, 0
  %v1716 = vsel %vm176, %v1261, 0
  %v1719 = vsel %vm176, %v1263, 0
  %1721 = vmatprep.subr.mxu0 0.0
  %1722 = vmatpush1.msra.mxu0 0.0
  %1723 = vmatprep.subr.mxu0 0.0
  %1724 = vmatpush1.msra.mxu0 0.0
  %1725 = vmatprep.subr.mxu0 0.0
  %1726 = vmatpush1.msra.mxu0 0.0
  %1727 = vmatprep.subr.mxu0 0.0
  %1728 = vmatpush1.msra.mxu0 0.0
  %1729 = vmatprep.subr.mxu0 0.0
  %1730 = vmatpush1.msra.mxu0 0.0
  %1731 = vmatprep.subr.mxu0 0.0
  %1732 = vmatpush1.msra.mxu0 0.0
  %1733 = vmatprep.subr.mxu0 0.0
  %1734 = vmatpush1.msra.mxu0 0.0
  %1735 = vmatprep.subr.mxu0 0.0
  %1736 = vmatpush1.msra.mxu0 0.0
  %1737 = vmatprep.subr.mxu0 0.0
  %1738 = vmatpush1.msra.mxu0 0.0
  %1739 = vmatprep.subr.mxu0 0.0
  %1740 = vmatpush1.msra.mxu0 0.0
  %1741 = vmatprep.subr.mxu0 %v1719
  %1742 = vmatpush1.msra.mxu0 %v1716
  %1743 = vmatprep.subr.mxu0 %v1257
  %1744 = vmatpush1.msra.mxu0 %v1255
  %1745 = vmatprep.subr.mxu0 %v1251
  %1746 = vmatpush1.msra.mxu0 %v1249
  %1747 = vmatprep.subr.mxu0 %v1245
  %1748 = vmatpush1.msra.mxu0 %v1243
  %1749 = vmatprep.subr.mxu0 %v1239
  %1750 = vmatpush1.msra.mxu0 %v1237
  %1751 = vmatprep.subr.mxu0 %v1233
  %1752 = vmatpush1.msra.mxu0 %v1231
  %1753 = vmatprep.subr.mxu0 0.0
  %1754 = vmatpush2.msra.mxu0 0.0
  %1755 = vmatprep.subr.mxu0 0.0
  %1756 = vmatpush2.msra.mxu0 0.0
  %1757 = vmatprep.subr.mxu0 0.0
  %1758 = vmatpush2.msra.mxu0 0.0
  %1759 = vmatprep.subr.mxu0 0.0
  %1760 = vmatpush2.msra.mxu0 0.0
  %1761 = vmatprep.subr.mxu0 0.0
  %1762 = vmatpush2.msra.mxu0 0.0
  %1763 = vmatprep.subr.mxu0 0.0
  %1764 = vmatpush2.msra.mxu0 0.0
  %1765 = vmatprep.subr.mxu0 0.0
  %1766 = vmatpush2.msra.mxu0 0.0
  %1767 = vmatprep.subr.mxu0 0.0
  %1768 = vmatpush2.msra.mxu0 0.0
  %1769 = vmatprep.subr.mxu0 0.0
  %1770 = vmatpush2.msra.mxu0 0.0
  %1771 = vmatprep.subr.mxu0 0.0
  %1772 = vmatpush2.msra.mxu0 0.0
  %1773 = vmatprep.subr.mxu0 0.0
  %1774 = vmatpush2.msra.mxu0 0.0
  %1775 = vmatprep.subr.mxu0 0.0
  %1776 = vmatpush2.msra.mxu0 0.0
  %1777 = vmatprep.subr.mxu0 0.0
  %1778 = vmatpush2.msra.mxu0 0.0
  %1779 = vmatprep.subr.mxu0 0.0
  %1780 = vmatpush2.msra.mxu0 0.0
  %1781 = vmatprep.subr.mxu0 0.0
  %1782 = vmatpush2.msra.mxu0 0.0
  %1783 = vmatprep.subr.mxu0 0.0
  %1784 = vmatpush2.msra.mxu0 0.0
  %1785 = vmatprep.mubr.f32.mxu0 0.0
  %1786 = vmatmul.mubr.f32.gmra.mxu0 %v1707
  %v1787 = vpop.f32.mrf.mxu0
  %v1788 = vadd.f32 0.0, %v1787
  %v1789 = vpop.f32.mrf.mxu0
  %v1790 = vadd.f32 0.0, %v1789
  %1791 = vmatprep.mubr.f32.mxu0 0.0
  %1792 = vmatmul.mubr.f32.gmra.mxu0 %v1710
  %v1793 = vpop.f32.mrf.mxu0
  %v1794 = vadd.f32 0.0, %v1793
  %v1795 = vpop.f32.mrf.mxu0
  %v1796 = vadd.f32 0.0, %v1795
  %1797 = vmatprep.mubr.f32.mxu0 0.0
  %1798 = vmatmul.mubr.f32.gmra.mxu0 %v1713
  %v1799 = vpop.f32.mrf.mxu0
  %v1800 = vadd.f32 0.0, %v1799
  %v1801 = vpop.f32.mrf.mxu0
  %v1802 = vadd.f32 0.0, %v1801
  %1803 = vdwg.mxu0
  %v1804 = vadd.f32 %v1696, %v1788
  %v1805 = vadd.f32 %v1697, %v1790
  %v1806 = vadd.f32 %v1698, %v1794
  %v1807 = vadd.f32 %v1699, %v1796
  %v1808 = vadd.f32 %v1700, %v1800
  %v1809 = vadd.f32 %v1701, %v1802
  %v1810 = vld [vmem:[%s5] sm:$0x3]
  %v1811 = vld [vmem:[%s4] sm:$0xff]
  %v1812 = vld [vmem:[%s4 + $0x8] sm:$0xff]
  %v1813 = vld [vmem:[%s4 + $0x10] sm:$0xff]
  %v1814 = vld [vmem:[%s4 + $0x18] sm:$0xff]
  %v1815 = vld [vmem:[%s4 + $0x20] sm:$0xff]
  %v1816 = vld [vmem:[%s4 + $0x28] sm:$0xff]
  %v1817 = vld [vmem:[%s4 + $0x30] sm:$0xff]
  %v1818 = vld [vmem:[%s4 + $0x38] sm:$0xff]
  %v1819 = vld [vmem:[%s4 + $0x40] sm:$0xff]
  %v1820 = vld [vmem:[%s4 + $0x48] sm:$0xff]
  %v1821 = vld [vmem:[%s4 + $0x50] sm:$0xff]
  %v1822 = vld [vmem:[%s4 + $0x58] sm:$0xff]
  %v1823 = vld [vmem:[%s4 + $0x60] sm:$0xff]
  %v1824 = vld [vmem:[%s4 + $0x68] sm:$0xff]
  %v1825 = vld [vmem:[%s4 + $0x70] sm:$0xff]
  %v1826 = vld [vmem:[%s4 + $0x78] sm:$0xff]
  %v1827 = vld [vmem:[%s4 + $0x80] sm:$0xff]
  %v1828 = vld [vmem:[%s4 + $0x88] sm:$0xff]
  %v1829 = vld [vmem:[%s4 + $0x90] sm:$0xff]
  %v1830 = vld [vmem:[%s4 + $0x98] sm:$0xff]
  %v1831 = vld [vmem:[%s4 + $0xa0] sm:$0xff]
  %v1832 = vld [vmem:[%s4 + $0xa8] sm:$0xff]
  %v1833 = vld [vmem:[%s4 + $0xb0] sm:$0xff]
  %v1834 = vld [vmem:[%s4 + $0xb8] sm:$0xff]
  %v1835 = vld [vmem:[%s4 + $0xc0] sm:$0xff]
  %v1836 = vld [vmem:[%s4 + $0xc8] sm:$0xff]
  %v1837 = vld [vmem:[%s4 + $0xd0] sm:$0xff]
  %v1838 = vld [vmem:[%s4 + $0xd8] sm:$0xff]
  %v1839 = vld [vmem:[%s4 + $0xe0] sm:$0xff]
  %v1840 = vld [vmem:[%s4 + $0xe8] sm:$0xff]
  %v1841 = vld [vmem:[%s4 + $0xf0] sm:$0xff]
  %v1842 = vld [vmem:[%s4 + $0xf8] sm:$0xff]
  %v1843 = vld [vmem:[%s4 + $0x100] sm:$0xff]
  %v1844 = vld [vmem:[%s4 + $0x108] sm:$0xff]
  %v1845 = vld [vmem:[%s4 + $0x110] sm:$0xff]
  %v1846 = vld [vmem:[%s4 + $0x118] sm:$0xff]
  %v1847 = vld [vmem:[%s4 + $0x120] sm:$0xff]
  %v1848 = vld [vmem:[%s4 + $0x128] sm:$0xff]
  %vm1849 = vcmask 195584
  %v1851 = vsel %vm1849, %v1805, 0
  %v1854 = vsel %vm1849, %v1807, 0
  %v1857 = vsel %vm1849, %v1809, 0
  %1859 = vmatprep.subr.mxu0 %v1842
  %1860 = vmatpush1.msra.mxu0 %v1841
  %1861 = vmatprep.subr.mxu0 %v1840
  %1862 = vmatpush1.msra.mxu0 %v1839
  %1863 = vmatprep.subr.mxu0 %v1838
  %1864 = vmatpush1.msra.mxu0 %v1837
  %1865 = vmatprep.subr.mxu0 %v1836
  %1866 = vmatpush1.msra.mxu0 %v1835
  %1867 = vmatprep.subr.mxu0 %v1834
  %1868 = vmatpush1.msra.mxu0 %v1833
  %1869 = vmatprep.subr.mxu0 %v1832
  %1870 = vmatpush1.msra.mxu0 %v1831
  %1871 = vmatprep.subr.mxu0 %v1830
  %1872 = vmatpush1.msra.mxu0 %v1829
  %1873 = vmatprep.subr.mxu0 %v1828
  %1874 = vmatpush1.msra.mxu0 %v1827
  %1875 = vmatprep.subr.mxu0 %v1826
  %1876 = vmatpush1.msra.mxu0 %v1825
  %1877 = vmatprep.subr.mxu0 %v1824
  %1878 = vmatpush1.msra.mxu0 %v1823
  %1879 = vmatprep.subr.mxu0 %v1822
  %1880 = vmatpush1.msra.mxu0 %v1821
  %1881 = vmatprep.subr.mxu0 %v1820
  %1882 = vmatpush1.msra.mxu0 %v1819
  %1883 = vmatprep.subr.mxu0 %v1818
  %1884 = vmatpush1.msra.mxu0 %v1817
  %1885 = vmatprep.subr.mxu0 %v1816
  %1886 = vmatpush1.msra.mxu0 %v1815
  %1887 = vmatprep.subr.mxu0 %v1814
  %1888 = vmatpush1.msra.mxu0 %v1813
  %1889 = vmatprep.subr.mxu0 %v1812
  %1890 = vmatpush1.msra.mxu0 %v1811
  %1891 = vmatprep.subr.mxu0 0.0
  %1892 = vmatpush2.msra.mxu0 0.0
  %1893 = vmatprep.subr.mxu0 0.0
  %1894 = vmatpush2.msra.mxu0 0.0
  %1895 = vmatprep.subr.mxu0 0.0
  %1896 = vmatpush2.msra.mxu0 0.0
  %1897 = vmatprep.subr.mxu0 0.0
  %1898 = vmatpush2.msra.mxu0 0.0
  %1899 = vmatprep.subr.mxu0 0.0
  %1900 = vmatpush2.msra.mxu0 0.0
  %1901 = vmatprep.subr.mxu0 0.0
  %1902 = vmatpush2.msra.mxu0 0.0
  %1903 = vmatprep.subr.mxu0 0.0
  %1904 = vmatpush2.msra.mxu0 0.0
  %1905 = vmatprep.subr.mxu0 0.0
  %1906 = vmatpush2.msra.mxu0 0.0
  %1907 = vmatprep.subr.mxu0 0.0
  %1908 = vmatpush2.msra.mxu0 0.0
  %1909 = vmatprep.subr.mxu0 0.0
  %1910 = vmatpush2.msra.mxu0 0.0
  %1911 = vmatprep.subr.mxu0 0.0
  %1912 = vmatpush2.msra.mxu0 0.0
  %1913 = vmatprep.subr.mxu0 0.0
  %1914 = vmatpush2.msra.mxu0 0.0
  %1915 = vmatprep.subr.mxu0 0.0
  %1916 = vmatpush2.msra.mxu0 0.0
  %1917 = vmatprep.subr.mxu0 %v1848
  %1918 = vmatpush2.msra.mxu0 %v1847
  %1919 = vmatprep.subr.mxu0 %v1846
  %1920 = vmatpush2.msra.mxu0 %v1845
  %1921 = vmatprep.subr.mxu0 %v1844
  %1922 = vmatpush2.msra.mxu0 %v1843
  %1923 = vmatprep.mubr.f32.mxu0 %v1851
  %1924 = vmatmul.mubr.f32.gmra.mxu0 %v1804
  %v1925 = vpop.f32.mrf.mxu0
  %v1926 = vadd.f32 0.0, %v1925
  %v1927 = vpop.f32.mrf.mxu0
  %v1928 = vadd.f32 0.0, %v1927
  %1929 = vmatprep.mubr.f32.mxu0 %v1854
  %1930 = vmatmul.mubr.f32.gmra.mxu0 %v1806
  %v1931 = vpop.f32.mrf.mxu0
  %v1932 = vadd.f32 0.0, %v1931
  %v1933 = vpop.f32.mrf.mxu0
  %v1934 = vadd.f32 0.0, %v1933
  %1935 = vmatprep.mubr.f32.mxu0 %v1857
  %1936 = vmatmul.mubr.f32.gmra.mxu0 %v1808
  %v1937 = vpop.f32.mrf.mxu0
  %v1938 = vadd.f32 0.0, %v1937
  %v1939 = vpop.f32.mrf.mxu0
  %v1940 = vadd.f32 0.0, %v1939
  %1941 = vdwg.mxu0
  %v1943 = vlaneseq
  %v1944 = vshrl.u32 %v1943, 7
  %v1945 = vsub.s32 0, %v1944
  %v1946 = vrot.slane %v1810, %v1945
  %v1947 = vlaneseq
  %v1948 = vshrl.u32 %v1947, 7
  %v1949 = vsub.s32 1, %v1948
  %v1950 = vrot.slane %v1810, %v1949
  %v1953 = vadd.f32 %v1946, %v1926
  %v1954 = vadd.f32 %v1950, %v1928
  %v1955 = vadd.f32 %v1946, %v1932
  %v1956 = vadd.f32 %v1950, %v1934
  %v1957 = vadd.f32 %v1946, %v1938
  %v1958 = vadd.f32 %v1950, %v1940
  %s1959 = scalar_lea.vmem %s4, 304
  %v1960 = vld [vmem:[%s1959] sm:$0xff]
  %v1961 = vld [vmem:[%s1959 + $0x8] sm:$0xff]
  %v1962 = vld [vmem:[%s1959 + $0x10] sm:$0xff]
  %v1963 = vld [vmem:[%s1959 + $0x18] sm:$0xff]
  %v1964 = vld [vmem:[%s1959 + $0x20] sm:$0xff]
  %v1965 = vld [vmem:[%s1959 + $0x28] sm:$0xff]
  %v1966 = vld [vmem:[%s1959 + $0x30] sm:$0xff]
  %v1967 = vld [vmem:[%s1959 + $0x38] sm:$0xff]
  %v1968 = vld [vmem:[%s1959 + $0x40] sm:$0xff]
  %v1969 = vld [vmem:[%s1959 + $0x48] sm:$0xff]
  %v1970 = vld [vmem:[%s1959 + $0x50] sm:$0xff]
  %v1971 = vld [vmem:[%s1959 + $0x58] sm:$0xff]
  %v1972 = vld [vmem:[%s1959 + $0x60] sm:$0xff]
  %v1973 = vld [vmem:[%s1959 + $0x68] sm:$0xff]
  %v1974 = vld [vmem:[%s1959 + $0x70] sm:$0xff]
  %v1975 = vld [vmem:[%s1959 + $0x78] sm:$0xff]
  %v1976 = vld [vmem:[%s1959 + $0x80] sm:$0xff]
  %v1977 = vld [vmem:[%s1959 + $0x88] sm:$0xff]
  %v1978 = vld [vmem:[%s1959 + $0x90] sm:$0xff]
  %v1979 = vld [vmem:[%s1959 + $0x98] sm:$0xff]
  %v1980 = vld [vmem:[%s1959 + $0xa0] sm:$0xff]
  %v1981 = vld [vmem:[%s1959 + $0xa8] sm:$0xff]
  %v1982 = vld [vmem:[%s1959 + $0xb0] sm:$0xff]
  %v1983 = vld [vmem:[%s1959 + $0xb8] sm:$0xff]
  %v1984 = vld [vmem:[%s1959 + $0xc0] sm:$0xff]
  %v1985 = vld [vmem:[%s1959 + $0xc8] sm:$0xff]
  %v1986 = vld [vmem:[%s1959 + $0xd0] sm:$0xff]
  %v1987 = vld [vmem:[%s1959 + $0xd8] sm:$0xff]
  %v1988 = vld [vmem:[%s1959 + $0xe0] sm:$0xff]
  %v1989 = vld [vmem:[%s1959 + $0xe8] sm:$0xff]
  %v1990 = vld [vmem:[%s1959 + $0xf0] sm:$0xff]
  %v1991 = vld [vmem:[%s1959 + $0xf8] sm:$0xff]
  %v1992 = vld [vmem:[%s1959 + $0x100] sm:$0xff]
  %v1993 = vld [vmem:[%s1959 + $0x108] sm:$0xff]
  %v1994 = vld [vmem:[%s1959 + $0x110] sm:$0xff]
  %v1995 = vld [vmem:[%s1959 + $0x118] sm:$0xff]
  %v1996 = vld [vmem:[%s1959 + $0x120] sm:$0xff]
  %v1997 = vld [vmem:[%s1959 + $0x128] sm:$0xff]
  %vm2001 = vcmask 1046528
  %v2002 = vrot.slane %v1804, 1
  %v2003 = vrot.slane %v1806, 1
  %v2004 = vsel %vm2001, %v2002, %v2003
  %v2005 = vrot.slane %v1805, 1
  %v2006 = vrot.slane %v1807, 1
  %v2007 = vsel %vm2001, %v2005, %v2006
  %v2008 = vrot.slane %v1808, 1
  %v2009 = vsel %vm2001, %v2003, %v2008
  %v2010 = vrot.slane %v1809, 1
  %v2011 = vsel %vm2001, %v2006, %v2010
  %v2015 = vsel %vm1849, %v2007, 0
  %v2017 = vsel %vm1849, %v2011, 0
  %v2019 = vsel %vm1849, %v2010, 0
  %2021 = vmatprep.subr.mxu0 %v1991
  %2022 = vmatpush1.msra.mxu0 %v1990
  %2023 = vmatprep.subr.mxu0 %v1989
  %2024 = vmatpush1.msra.mxu0 %v1988
  %2025 = vmatprep.subr.mxu0 %v1987
  %2026 = vmatpush1.msra.mxu0 %v1986
  %2027 = vmatprep.subr.mxu0 %v1985
  %2028 = vmatpush1.msra.mxu0 %v1984
  %2029 = vmatprep.subr.mxu0 %v1983
  %2030 = vmatpush1.msra.mxu0 %v1982
  %2031 = vmatprep.subr.mxu0 %v1981
  %2032 = vmatpush1.msra.mxu0 %v1980
  %2033 = vmatprep.subr.mxu0 %v1979
  %2034 = vmatpush1.msra.mxu0 %v1978
  %2035 = vmatprep.subr.mxu0 %v1977
  %2036 = vmatpush1.msra.mxu0 %v1976
  %2037 = vmatprep.subr.mxu0 %v1975
  %2038 = vmatpush1.msra.mxu0 %v1974
  %2039 = vmatprep.subr.mxu0 %v1973
  %2040 = vmatpush1.msra.mxu0 %v1972
  %2041 = vmatprep.subr.mxu0 %v1971
  %2042 = vmatpush1.msra.mxu0 %v1970
  %2043 = vmatprep.subr.mxu0 %v1969
  %2044 = vmatpush1.msra.mxu0 %v1968
  %2045 = vmatprep.subr.mxu0 %v1967
  %2046 = vmatpush1.msra.mxu0 %v1966
  %2047 = vmatprep.subr.mxu0 %v1965
  %2048 = vmatpush1.msra.mxu0 %v1964
  %2049 = vmatprep.subr.mxu0 %v1963
  %2050 = vmatpush1.msra.mxu0 %v1962
  %2051 = vmatprep.subr.mxu0 %v1961
  %2052 = vmatpush1.msra.mxu0 %v1960
  %2053 = vmatprep.subr.mxu0 0.0
  %2054 = vmatpush2.msra.mxu0 0.0
  %2055 = vmatprep.subr.mxu0 0.0
  %2056 = vmatpush2.msra.mxu0 0.0
  %2057 = vmatprep.subr.mxu0 0.0
  %2058 = vmatpush2.msra.mxu0 0.0
  %2059 = vmatprep.subr.mxu0 0.0
  %2060 = vmatpush2.msra.mxu0 0.0
  %2061 = vmatprep.subr.mxu0 0.0
  %2062 = vmatpush2.msra.mxu0 0.0
  %2063 = vmatprep.subr.mxu0 0.0
  %2064 = vmatpush2.msra.mxu0 0.0
  %2065 = vmatprep.subr.mxu0 0.0
  %2066 = vmatpush2.msra.mxu0 0.0
  %2067 = vmatprep.subr.mxu0 0.0
  %2068 = vmatpush2.msra.mxu0 0.0
  %2069 = vmatprep.subr.mxu0 0.0
  %2070 = vmatpush2.msra.mxu0 0.0
  %2071 = vmatprep.subr.mxu0 0.0
  %2072 = vmatpush2.msra.mxu0 0.0
  %2073 = vmatprep.subr.mxu0 0.0
  %2074 = vmatpush2.msra.mxu0 0.0
  %2075 = vmatprep.subr.mxu0 0.0
  %2076 = vmatpush2.msra.mxu0 0.0
  %2077 = vmatprep.subr.mxu0 0.0
  %2078 = vmatpush2.msra.mxu0 0.0
  %2079 = vmatprep.subr.mxu0 %v1997
  %2080 = vmatpush2.msra.mxu0 %v1996
  %2081 = vmatprep.subr.mxu0 %v1995
  %2082 = vmatpush2.msra.mxu0 %v1994
  %2083 = vmatprep.subr.mxu0 %v1993
  %2084 = vmatpush2.msra.mxu0 %v1992
  %2085 = vmatprep.mubr.f32.mxu0 %v2015
  %2086 = vmatmul.mubr.f32.gmra.mxu0 %v2004
  %v2087 = vpop.f32.mrf.mxu0
  %v2088 = vadd.f32 0.0, %v2087
  %v2089 = vpop.f32.mrf.mxu0
  %v2090 = vadd.f32 0.0, %v2089
  %2091 = vmatprep.mubr.f32.mxu0 %v2017
  %2092 = vmatmul.mubr.f32.gmra.mxu0 %v2009
  %v2093 = vpop.f32.mrf.mxu0
  %v2094 = vadd.f32 0.0, %v2093
  %v2095 = vpop.f32.mrf.mxu0
  %v2096 = vadd.f32 0.0, %v2095
  %2097 = vmatprep.mubr.f32.mxu0 %v2019
  %2098 = vmatmul.mubr.f32.gmra.mxu0 %v2008
  %v2099 = vpop.f32.mrf.mxu0
  %v2100 = vadd.f32 0.0, %v2099
  %v2101 = vpop.f32.mrf.mxu0
  %v2102 = vadd.f32 0.0, %v2101
  %2103 = vdwg.mxu0
  %v2104 = vadd.f32 %v1953, %v2088
  %v2105 = vadd.f32 %v1954, %v2090
  %v2106 = vadd.f32 %v1955, %v2094
  %v2107 = vadd.f32 %v1956, %v2096
  %v2108 = vadd.f32 %v1957, %v2100
  %v2109 = vadd.f32 %v1958, %v2102
  %s2110 = scalar_lea.vmem %s4, 608
  %v2111 = vld [vmem:[%s2110] sm:$0xff]
  %v2112 = vld [vmem:[%s2110 + $0x8] sm:$0xff]
  %v2113 = vld [vmem:[%s2110 + $0x10] sm:$0xff]
  %v2114 = vld [vmem:[%s2110 + $0x18] sm:$0xff]
  %v2115 = vld [vmem:[%s2110 + $0x20] sm:$0xff]
  %v2116 = vld [vmem:[%s2110 + $0x28] sm:$0xff]
  %v2117 = vld [vmem:[%s2110 + $0x30] sm:$0xff]
  %v2118 = vld [vmem:[%s2110 + $0x38] sm:$0xff]
  %v2119 = vld [vmem:[%s2110 + $0x40] sm:$0xff]
  %v2120 = vld [vmem:[%s2110 + $0x48] sm:$0xff]
  %v2121 = vld [vmem:[%s2110 + $0x50] sm:$0xff]
  %v2122 = vld [vmem:[%s2110 + $0x58] sm:$0xff]
  %v2123 = vld [vmem:[%s2110 + $0x60] sm:$0xff]
  %v2124 = vld [vmem:[%s2110 + $0x68] sm:$0xff]
  %v2125 = vld [vmem:[%s2110 + $0x70] sm:$0xff]
  %v2126 = vld [vmem:[%s2110 + $0x78] sm:$0xff]
  %v2127 = vld [vmem:[%s2110 + $0x80] sm:$0xff]
  %v2128 = vld [vmem:[%s2110 + $0x88] sm:$0xff]
  %v2129 = vld [vmem:[%s2110 + $0x90] sm:$0xff]
  %v2130 = vld [vmem:[%s2110 + $0x98] sm:$0xff]
  %v2131 = vld [vmem:[%s2110 + $0xa0] sm:$0xff]
  %v2132 = vld [vmem:[%s2110 + $0xa8] sm:$0xff]
  %v2133 = vld [vmem:[%s2110 + $0xb0] sm:$0xff]
  %v2134 = vld [vmem:[%s2110 + $0xb8] sm:$0xff]
  %v2135 = vld [vmem:[%s2110 + $0xc0] sm:$0xff]
  %v2136 = vld [vmem:[%s2110 + $0xc8] sm:$0xff]
  %v2137 = vld [vmem:[%s2110 + $0xd0] sm:$0xff]
  %v2138 = vld [vmem:[%s2110 + $0xd8] sm:$0xff]
  %v2139 = vld [vmem:[%s2110 + $0xe0] sm:$0xff]
  %v2140 = vld [vmem:[%s2110 + $0xe8] sm:$0xff]
  %v2141 = vld [vmem:[%s2110 + $0xf0] sm:$0xff]
  %v2142 = vld [vmem:[%s2110 + $0xf8] sm:$0xff]
  %v2143 = vld [vmem:[%s2110 + $0x100] sm:$0xff]
  %v2144 = vld [vmem:[%s2110 + $0x108] sm:$0xff]
  %v2145 = vld [vmem:[%s2110 + $0x110] sm:$0xff]
  %v2146 = vld [vmem:[%s2110 + $0x118] sm:$0xff]
  %v2147 = vld [vmem:[%s2110 + $0x120] sm:$0xff]
  %v2148 = vld [vmem:[%s2110 + $0x128] sm:$0xff]
  %vm2149 = vcmask 1045504
  %v2150 = vrot.slane %v1804, 2
  %v2151 = vrot.slane %v1806, 2
  %v2152 = vsel %vm2149, %v2150, %v2151
  %v2153 = vrot.slane %v1805, 2
  %v2154 = vrot.slane %v1807, 2
  %v2155 = vsel %vm2149, %v2153, %v2154
  %v2156 = vrot.slane %v1808, 2
  %v2157 = vsel %vm2149, %v2151, %v2156
  %v2158 = vrot.slane %v1809, 2
  %v2159 = vsel %vm2149, %v2154, %v2158
  %v2163 = vsel %vm1849, %v2155, 0
  %v2165 = vsel %vm1849, %v2159, 0
  %v2167 = vsel %vm1849, %v2158, 0
  %2169 = vmatprep.subr.mxu0 %v2142
  %2170 = vmatpush1.msra.mxu0 %v2141
  %2171 = vmatprep.subr.mxu0 %v2140
  %2172 = vmatpush1.msra.mxu0 %v2139
  %2173 = vmatprep.subr.mxu0 %v2138
  %2174 = vmatpush1.msra.mxu0 %v2137
  %2175 = vmatprep.subr.mxu0 %v2136
  %2176 = vmatpush1.msra.mxu0 %v2135
  %2177 = vmatprep.subr.mxu0 %v2134
  %2178 = vmatpush1.msra.mxu0 %v2133
  %2179 = vmatprep.subr.mxu0 %v2132
  %2180 = vmatpush1.msra.mxu0 %v2131
  %2181 = vmatprep.subr.mxu0 %v2130
  %2182 = vmatpush1.msra.mxu0 %v2129
  %2183 = vmatprep.subr.mxu0 %v2128
  %2184 = vmatpush1.msra.mxu0 %v2127
  %2185 = vmatprep.subr.mxu0 %v2126
  %2186 = vmatpush1.msra.mxu0 %v2125
  %2187 = vmatprep.subr.mxu0 %v2124
  %2188 = vmatpush1.msra.mxu0 %v2123
  %2189 = vmatprep.subr.mxu0 %v2122
  %2190 = vmatpush1.msra.mxu0 %v2121
  %2191 = vmatprep.subr.mxu0 %v2120
  %2192 = vmatpush1.msra.mxu0 %v2119
  %2193 = vmatprep.subr.mxu0 %v2118
  %2194 = vmatpush1.msra.mxu0 %v2117
  %2195 = vmatprep.subr.mxu0 %v2116
  %2196 = vmatpush1.msra.mxu0 %v2115
  %2197 = vmatprep.subr.mxu0 %v2114
  %2198 = vmatpush1.msra.mxu0 %v2113
  %2199 = vmatprep.subr.mxu0 %v2112
  %2200 = vmatpush1.msra.mxu0 %v2111
  %2201 = vmatprep.subr.mxu0 0.0
  %2202 = vmatpush2.msra.mxu0 0.0
  %2203 = vmatprep.subr.mxu0 0.0
  %2204 = vmatpush2.msra.mxu0 0.0
  %2205 = vmatprep.subr.mxu0 0.0
  %2206 = vmatpush2.msra.mxu0 0.0
  %2207 = vmatprep.subr.mxu0 0.0
  %2208 = vmatpush2.msra.mxu0 0.0
  %2209 = vmatprep.subr.mxu0 0.0
  %2210 = vmatpush2.msra.mxu0 0.0
  %2211 = vmatprep.subr.mxu0 0.0
  %2212 = vmatpush2.msra.mxu0 0.0
  %2213 = vmatprep.subr.mxu0 0.0
  %2214 = vmatpush2.msra.mxu0 0.0
  %2215 = vmatprep.subr.mxu0 0.0
  %2216 = vmatpush2.msra.mxu0 0.0
  %2217 = vmatprep.subr.mxu0 0.0
  %2218 = vmatpush2.msra.mxu0 0.0
  %2219 = vmatprep.subr.mxu0 0.0
  %2220 = vmatpush2.msra.mxu0 0.0
  %2221 = vmatprep.subr.mxu0 0.0
  %2222 = vmatpush2.msra.mxu0 0.0
  %2223 = vmatprep.subr.mxu0 0.0
  %2224 = vmatpush2.msra.mxu0 0.0
  %2225 = vmatprep.subr.mxu0 0.0
  %2226 = vmatpush2.msra.mxu0 0.0
  %2227 = vmatprep.subr.mxu0 %v2148
  %2228 = vmatpush2.msra.mxu0 %v2147
  %2229 = vmatprep.subr.mxu0 %v2146
  %2230 = vmatpush2.msra.mxu0 %v2145
  %2231 = vmatprep.subr.mxu0 %v2144
  %2232 = vmatpush2.msra.mxu0 %v2143
  %2233 = vmatprep.mubr.f32.mxu0 %v2163
  %2234 = vmatmul.mubr.f32.gmra.mxu0 %v2152
  %v2235 = vpop.f32.mrf.mxu0
  %v2236 = vadd.f32 0.0, %v2235
  %v2237 = vpop.f32.mrf.mxu0
  %v2238 = vadd.f32 0.0, %v2237
  %2239 = vmatprep.mubr.f32.mxu0 %v2165
  %2240 = vmatmul.mubr.f32.gmra.mxu0 %v2157
  %v2241 = vpop.f32.mrf.mxu0
  %v2242 = vadd.f32 0.0, %v2241
  %v2243 = vpop.f32.mrf.mxu0
  %v2244 = vadd.f32 0.0, %v2243
  %2245 = vmatprep.mubr.f32.mxu0 %v2167
  %2246 = vmatmul.mubr.f32.gmra.mxu0 %v2156
  %v2247 = vpop.f32.mrf.mxu0
  %v2248 = vadd.f32 0.0, %v2247
  %v2249 = vpop.f32.mrf.mxu0
  %v2250 = vadd.f32 0.0, %v2249
  %2251 = vdwg.mxu0
  %v2252 = vadd.f32 %v2104, %v2236
  %v2253 = vadd.f32 %v2105, %v2238
  %v2254 = vadd.f32 %v2106, %v2242
  %v2255 = vadd.f32 %v2107, %v2244
  %v2256 = vadd.f32 %v2108, %v2248
  %v2257 = vadd.f32 %v2109, %v2250
  %vm2258 = vcmask 154624
  %2259 = vst.msk [vmem:[%s6] sm:$0xff] %vm2258, %v2252
  %2260 = vst.msk [vmem:[%s6 + $0x8] sm:$0xff] %vm2258, %v2254
  %vm2261 = vcmask 149504
  %2262 = vst.msk [vmem:[%s6 + $0x10] sm:$0x7] %vm2261, %v2256
  %s2263 = scalar_lea.vmem %s6, 24
  %2264 = vst.msk [vmem:[%s2263] sm:$0xff] %vm2258, %v2253
  %2265 = vst.msk [vmem:[%s2263 + $0x8] sm:$0xff] %vm2258, %v2255
  %2266 = vst.msk [vmem:[%s2263 + $0x10] sm:$0x7] %vm2261, %v2257
  // Predicated region
  $region26: #{model_forward.1} parent=0 // pred_check
    _
  $region27: #{model_forward.1} parent=0 // pred_check_branch
    %2268 = sbr.rel (0) target = $region29
  $region28: #{model_forward.1} parent=0 // pred_region
    _
  $region29: #{model_forward.1} parent=0 // pred_fallthru
    _
  // Predicated region
  $region30: #{model_forward.1} parent=0 // pred_check
    _
  $region31: #{model_forward.1} parent=0 // pred_check_branch
    %2270 = sbr.rel (0) target = $region33
  $region32: #{model_forward.1} parent=0 // pred_region
    _
  $region33: #{model_forward.1} parent=0 // pred_fallthru
    _

</llo_original>
